<compile_context>
chip_gen: v7x
topology: tpu7x:2x2x1
jax: 0.10.0
libtpu: 0.0.40
codegen_flags: <defaults>
</compile_context>

<pallas_src>
import functools

import jax
import jax.numpy as jnp
from jax.experimental import pallas as pl
from jax.experimental.pallas import tpu as pltpu

LANE = 128


def _round_up(n, m):
    return ((n + m - 1) // m) * m


def _pad2(a, rows, cols):
    return jnp.pad(a, ((0, rows - a.shape[0]), (0, cols - a.shape[1])))


def _vmem_capacity_bytes():
    try:
        return int(pltpu.get_tpu_info().vmem_capacity_bytes)
    except Exception:
        return 64 * 1024 * 1024   # conservative fallback (v7x per-TC VMEM)


def _check_blocks(blocks, x, params):
    assert len(blocks) == 3 and len(params) == 3
    assert x.shape[0] == blocks[0].shape[1], "x rows must equal Ns of block 0"
    for l in range(3):
        assert blocks[l].shape[0] <= blocks[l].shape[1], \
            "dst nodes must be a prefix of src nodes (DGL block)"
    for l in range(2):
        assert blocks[l + 1].shape[1] == blocks[l].shape[0], \
            "DGL block chaining violated: Ns_{l+1} must equal Nd_l"


def _padded_dims(blocks, x, params):
    # node counts per hop (n0 src ... n3 output dst) and feature dims per layer
    n = [blocks[0].shape[1]] + [b.shape[0] for b in blocks]
    n_p = [_round_up(v, LANE) for v in n]
    feat = [x.shape[1]] + [p[0].shape[1] for p in params]
    feat_p = [_round_up(f, LANE) for f in feat]
    return n, n_p, feat, feat_p


def _fused_footprint_bytes(blocks, x, params):
    n, n_p, feat, feat_p = _padded_dims(blocks, x, params)
    in_b = n_p[0] * feat_p[0] * 2                                  # x (bf16)
    for l in range(3):
        in_b += n_p[l + 1] * n_p[l] * 2                            # A_l (bf16)
        in_b += 2 * feat_p[l] * feat_p[l + 1] * 2                  # W_self + W_neigh (bf16)
        in_b += feat_p[l + 1] * 4                                  # bias (f32)
    out_b = n_p[3] * feat_p[3] * 4
    # largest live intermediate inside the kernel (h_neigh f32 + layer output)
    interm = max(n_p[l + 1] * (feat_p[l] * 4 + feat_p[l + 1] * 4) for l in range(3))
    # 2x: Pallas double-buffers pipelined operands
    return 2 * (in_b + out_b) + interm + (4 << 20)


# ---------------------------------------------------------------------------
# Fused (all-VMEM-resident) 3-layer path
# ---------------------------------------------------------------------------
def _sage3_fused_kernel(a0_ref, a1_ref, a2_ref, x_ref,
                        ws0_ref, wn0_ref, b0_ref,
                        ws1_ref, wn1_ref, b1_ref,
                        ws2_ref, wn2_ref, b2_ref,
                        o_ref):
    """Fused 3-layer SAGEConv('mean') forward; everything resident in VMEM."""

    def layer(a_ref, h_bf16, ws_ref, wn_ref, b_ref, last):
        nd = a_ref.shape[0]                                   # 128-aligned -> tile-aligned slice
        # mean aggregation (rows of A carry the 1/degree normalization)
        h_neigh = jnp.dot(a_ref[...], h_bf16,
                          preferred_element_type=jnp.float32)           # (Nd, Fin_p) f32
        # self + neighbour projections: two bf16 MXU dots, f32 accumulation
        out = (jnp.dot(h_bf16[:nd, :], ws_ref[...],
                       preferred_element_type=jnp.float32)
               + jnp.dot(h_neigh.astype(jnp.bfloat16), wn_ref[...],
                         preferred_element_type=jnp.float32)
               + b_ref[...])
        if last:
            return out                                                  # f32 final output
        # ReLU; dropout(0.5) == identity in inference.  Keep inter-layer h in bf16.
        return jnp.maximum(out, 0.0).astype(jnp.bfloat16)

    h = x_ref[...]                                                      # bf16, pre-cast in wrapper
    h = layer(a0_ref, h, ws0_ref, wn0_ref, b0_ref, False)
    h = layer(a1_ref, h, ws1_ref, wn1_ref, b1_ref, False)
    h = layer(a2_ref, h, ws2_ref, wn2_ref, b2_ref, True)
    o_ref[...] = h.astype(o_ref.dtype)


def sage_forward_fused(blocks, x, params):
    _check_blocks(blocks, x, params)
    n, n_p, feat, feat_p = _padded_dims(blocks, x, params)

    # wrapper-side bf16 casts + zero padding (lane-dense operands, no in-kernel casts)
    x_p = _pad2(x, n_p[0], feat_p[0]).astype(jnp.bfloat16)
    a_p = [_pad2(blocks[l], n_p[l + 1], n_p[l]).astype(jnp.bfloat16) for l in range(3)]

    ws_p, wn_p, b_p = [], [], []
    for l, (w_self, w_neigh, bias) in enumerate(params):
        ws_p.append(_pad2(w_self, feat_p[l], feat_p[l + 1]).astype(jnp.bfloat16))
        wn_p.append(_pad2(w_neigh, feat_p[l], feat_p[l + 1]).astype(jnp.bfloat16))
        b_p.append(jnp.pad(bias, (0, feat_p[l + 1] - feat[l + 1]))
                   .reshape(1, feat_p[l + 1]).astype(jnp.float32))

    args = (a_p[0], a_p[1], a_p[2], x_p,
            ws_p[0], wn_p[0], b_p[0],
            ws_p[1], wn_p[1], b_p[1],
            ws_p[2], wn_p[2], b_p[2])

    nd_out, out_p = n_p[3], feat_p[3]

    def full_spec(shape):
        return pl.BlockSpec(shape, lambda i: (0,) * len(shape))

    flops = 0
    for l in range(3):
        flops += 2 * n_p[l + 1] * n_p[l] * feat_p[l]                 # A @ h
        flops += 2 * 2 * n_p[l + 1] * feat_p[l] * feat_p[l + 1]      # self + neigh projection
    in_bytes = sum(int(a.size) * a.dtype.itemsize for a in args)
    out_bytes = nd_out * out_p * 4

    vmem_limit = int(min(max(_fused_footprint_bytes(blocks, x, params), 32 << 20),
                         _vmem_capacity_bytes()))

    out_padded = pl.pallas_call(
        _sage3_fused_kernel,
        out_shape=jax.ShapeDtypeStruct((nd_out, out_p), jnp.float32),
        grid=(1,),
        in_specs=[full_spec(a.shape) for a in args],
        out_specs=full_spec((nd_out, out_p)),
        compiler_params=pltpu.CompilerParams(
            dimension_semantics=("arbitrary",),
            vmem_limit_bytes=vmem_limit,
        ),
        cost_estimate=pl.CostEstimate(flops=int(flops), transcendentals=0,
                                      bytes_accessed=int(in_bytes + out_bytes)),
    )(*args)
    return out_padded[:n[3], :feat[3]]


# ---------------------------------------------------------------------------
# Tiled per-layer path (blocks too large for VMEM residency, e.g. on v7x)
# ---------------------------------------------------------------------------
def _sageconv_tiled_kernel(a_ref, hsrc_ref, hself_ref, ws_ref, wn_ref, b_ref,
                           o_ref, acc_ref, *, relu):
    j = pl.program_id(1)

    @pl.when(j == 0)
    def _():
        acc_ref[...] = jnp.zeros_like(acc_ref)

    # mean aggregation, reduced over Ns tiles into the f32 VMEM accumulator
    acc_ref[...] += jnp.dot(a_ref[...], hsrc_ref[...],
                            preferred_element_type=jnp.float32)

    @pl.when(j == pl.num_programs(1) - 1)
    def _():
        out = (jnp.dot(hself_ref[...], ws_ref[...],
                       preferred_element_type=jnp.float32)
               + jnp.dot(acc_ref[...].astype(jnp.bfloat16), wn_ref[...],
                         preferred_element_type=jnp.float32)
               + b_ref[...])
        if relu:
            out = jnp.maximum(out, 0.0)     # dropout(0.5) == identity (inference)
        o_ref[...] = out.astype(o_ref.dtype)


def _sageconv_tiled(a, h_src, w_self_p, w_neigh_p, bias_p, *, relu, out_dtype,
                    tnd_max=256, tns_max=512):
    """One SAGEConv('mean') layer, tiled over (Nd, Ns).

    a:       (Nd, Ns) dense row-normalized adjacency
    h_src:   (R >= Ns, Fin_p) bf16 source features; rows >= Ns may be arbitrary
    returns: (Nd_p, Fout_p) out_dtype; rows >= Nd / lanes >= real Fout are padding
    """
    nd, ns = a.shape
    fin_p = h_src.shape[1]
    fout_p = w_self_p.shape[1]

    tnd = min(tnd_max, _round_up(nd, 16))
    tns = min(tns_max, _round_up(ns, LANE))
    nd_p = _round_up(nd, tnd)
    ns_p = _round_up(ns, tns)

    a_p = _pad2(a, nd_p, ns_p).astype(jnp.bfloat16)   # zero cols kill padded/garbage h rows
    rows = max(h_src.shape[0], ns_p, nd_p)
    h_p = jnp.pad(h_src, ((0, rows - h_src.shape[0]), (0, 0)))

    grid = (nd_p // tnd, ns_p // tns)

    flops = 2 * nd_p * ns_p * fin_p + 2 * 2 * nd_p * fin_p * fout_p
    bytes_accessed = (nd_p * ns_p * 2 + grid[0] * ns_p * fin_p * 2 + nd_p * fin_p * 2
                      + 2 * fin_p * fout_p * 2 + fout_p * 4
                      + nd_p * fout_p * jnp.dtype(out_dtype).itemsize)

    tile_bytes = (2 * (tnd * tns + tns * fin_p + tnd * fin_p) * 2   # double-buffered bf16 streams
                  + 2 * 2 * fin_p * fout_p * 2                      # W_self + W_neigh
                  + tnd * fin_p * 4                                  # f32 accumulator scratch
                  + 2 * tnd * fout_p * 4)                            # output tile
    vmem_limit = int(min(max(2 * tile_bytes + (4 << 20), 32 << 20),
                         _vmem_capacity_bytes()))

    return pl.pallas_call(
        functools.partial(_sageconv_tiled_kernel, relu=relu),
        out_shape=jax.ShapeDtypeStruct((nd_p, fout_p), out_dtype),
        grid=grid,
        in_specs=[
            pl.BlockSpec((tnd, tns), lambda i, j: (i, j)),        # A tile
            pl.BlockSpec((tns, fin_p), lambda i, j: (j, 0)),      # src features (aggregation)
            pl.BlockSpec((tnd, fin_p), lambda i, j: (i, 0)),      # dst (self) features
            pl.BlockSpec((fin_p, fout_p), lambda i, j: (0, 0)),   # W_self
            pl.BlockSpec((fin_p, fout_p), lambda i, j: (0, 0)),   # W_neigh
            pl.BlockSpec((1, fout_p), lambda i, j: (0, 0)),       # bias
        ],
        out_specs=pl.BlockSpec((tnd, fout_p), lambda i, j: (i, 0)),
        scratch_shapes=[pltpu.VMEM((tnd, fin_p), jnp.float32)],
        compiler_params=pltpu.CompilerParams(
            # Nd tiles parallel (engages v7x's 2nd TC); Ns reduction last / arbitrary
            dimension_semantics=("parallel", "arbitrary"),
            vmem_limit_bytes=vmem_limit,
        ),
        cost_estimate=pl.CostEstimate(flops=int(flops), transcendentals=0,
                                      bytes_accessed=int(bytes_accessed)),
    )(a_p, h_p, h_p, w_self_p, w_neigh_p, bias_p)


def sage_forward_tiled(blocks, x, params):
    _check_blocks(blocks, x, params)
    n, n_p, feat, feat_p = _padded_dims(blocks, x, params)

    h = _pad2(x, x.shape[0], feat_p[0]).astype(jnp.bfloat16)
    for l in range(3):
        w_self, w_neigh, bias = params[l]
        ws_p = _pad2(w_self, feat_p[l], feat_p[l + 1]).astype(jnp.bfloat16)
        wn_p = _pad2(w_neigh, feat_p[l], feat_p[l + 1]).astype(jnp.bfloat16)
        b_p = (jnp.pad(bias, (0, feat_p[l + 1] - feat[l + 1]))
               .reshape(1, feat_p[l + 1]).astype(jnp.float32))
        last = (l == 2)
        h = _sageconv_tiled(blocks[l], h, ws_p, wn_p, b_p,
                            relu=not last,
                            out_dtype=jnp.float32 if last else jnp.bfloat16)
    return h[:n[3], :feat[3]]


# ---------------------------------------------------------------------------
# Dispatch + reference + test harness
# ---------------------------------------------------------------------------
def sage_forward(blocks, x, params, force_tiled=False):
    """SAGE.forward (inference): 3 x SAGEConv('mean'), ReLU (+identity dropout) between."""
    if (not force_tiled
            and _fused_footprint_bytes(blocks, x, params) <= int(0.9 * _vmem_capacity_bytes())):
        return sage_forward_fused(blocks, x, params)
    return sage_forward_tiled(blocks, x, params)


def sage_forward_ref(blocks, x, params):
    """Pure-JAX f32 reference (DGL SAGEConv('mean') inference semantics)."""
    h = x
    n_layers = len(params)
    for l, (a, (w_self, w_neigh, bias)) in enumerate(zip(blocks, params)):
        nd = a.shape[0]
        h_neigh = a @ h
        h = h[:nd] @ w_self + h_neigh @ w_neigh + bias
        if l != n_layers - 1:
            h = jax.nn.relu(h)
    return h


def _xavier_uniform(key, fan_in, fan_out):
    limit = jnp.sqrt(6.0 / (fan_in + fan_out))
    return jax.random.uniform(
        key, (fan_in, fan_out), dtype=jnp.float32, minval=-limit, maxval=limit)


def make_params(key, in_size, hid_size, out_size):
    sizes = [(in_size, hid_size), (hid_size, hid_size), (hid_size, out_size)]
    params = []
    for (fi, fo) in sizes:
        key, k1, k2 = jax.random.split(key, 3)
        w_self = _xavier_uniform(k1, fi, fo)
        w_neigh = _xavier_uniform(k2, fi, fo)
        bias = jnp.zeros((fo,), dtype=jnp.float32)   # DGL SAGEConv bias init = 0
        params.append((w_self, w_neigh, bias))
    return params


def make_block(key, num_dst, num_src, p_edge=0.3):
    """Dense mean-aggregation matrix for a sampled bipartite block."""
    adj = (jax.random.uniform(key, (num_dst, num_src)) < p_edge).astype(jnp.float32)
    deg = jnp.sum(adj, axis=1, keepdims=True)
    return adj / jnp.maximum(deg, 1.0)   # zero-degree rows aggregate to 0


if __name__ == "__main__":
    key = jax.random.PRNGKey(0)

    in_size, hid_size, out_size = 16, 32, 8
    # node counts per hop: 64 src -> 32 -> 16 -> 8 output nodes
    n0, n1, n2, n3 = 64, 32, 16, 8

    key, kx, kb0, kb1, kb2, kp = jax.random.split(key, 6)
    x = jax.random.normal(kx, (n0, in_size), dtype=jnp.float32)
    blocks = [
        make_block(kb0, n1, n0),
        make_block(kb1, n2, n1),
        make_block(kb2, n3, n2),
    ]
    params = make_params(kp, in_size, hid_size, out_size)

    ref = sage_forward_ref(blocks, x, params)

    # fused all-in-VMEM path (auto-selected for these sizes)
    out_fused = jax.block_until_ready(sage_forward(blocks, x, params))
    assert out_fused.shape == (n3, out_size)
    # loose tolerance: bf16 MXU operands / bf16 inter-layer h, f32 accumulation
    assert jnp.allclose(out_fused, ref, atol=5e-2, rtol=5e-2)

    # tiled per-layer fallback path (forced here to exercise it)
    out_tiled = jax.block_until_ready(sage_forward(blocks, x, params, force_tiled=True))
    assert out_tiled.shape == (n3, out_size)
    assert jnp.allclose(out_tiled, ref, atol=5e-2, rtol=5e-2)

    print("KERNEL_OK")
</pallas_src>

<mosaic_0001>
module attributes {stable_mosaic.version = 11 : i64} {
  func.func @_sage3_fused_kernel(%arg0: i32, %arg1: memref<128x128xbf16, #tpu.memory_space<vmem>>, %arg2: memref<128x128xbf16, #tpu.memory_space<vmem>>, %arg3: memref<128x128xbf16, #tpu.memory_space<vmem>>, %arg4: memref<128x128xbf16, #tpu.memory_space<vmem>>, %arg5: memref<128x128xbf16, #tpu.memory_space<vmem>>, %arg6: memref<128x128xbf16, #tpu.memory_space<vmem>>, %arg7: memref<1x128xf32, #tpu.memory_space<vmem>>, %arg8: memref<128x128xbf16, #tpu.memory_space<vmem>>, %arg9: memref<128x128xbf16, #tpu.memory_space<vmem>>, %arg10: memref<1x128xf32, #tpu.memory_space<vmem>>, %arg11: memref<128x128xbf16, #tpu.memory_space<vmem>>, %arg12: memref<128x128xbf16, #tpu.memory_space<vmem>>, %arg13: memref<1x128xf32, #tpu.memory_space<vmem>>, %arg14: memref<128x128xf32, #tpu.memory_space<vmem>>) attributes {dimension_semantics = [#tpu.dimension_semantics<arbitrary>], iteration_bounds = array<i64: 1>, scalar_prefetch = 0 : i64, scratch_operands = 0 : i64, tpu.core_type = #tpu.core_type<tc>, window_params = [{pipeline_mode = #tpu.pipeline_mode<synchronous>, transform_indices = @transform_0, window_bounds = array<i64: 128, 128>}, {pipeline_mode = #tpu.pipeline_mode<synchronous>, transform_indices = @transform_1, window_bounds = array<i64: 128, 128>}, {pipeline_mode = #tpu.pipeline_mode<synchronous>, transform_indices = @transform_2, window_bounds = array<i64: 128, 128>}, {pipeline_mode = #tpu.pipeline_mode<synchronous>, transform_indices = @transform_3, window_bounds = array<i64: 128, 128>}, {pipeline_mode = #tpu.pipeline_mode<synchronous>, transform_indices = @transform_4, window_bounds = array<i64: 128, 128>}, {pipeline_mode = #tpu.pipeline_mode<synchronous>, transform_indices = @transform_5, window_bounds = array<i64: 128, 128>}, {pipeline_mode = #tpu.pipeline_mode<synchronous>, transform_indices = @transform_6, window_bounds = array<i64: 1, 128>}, {pipeline_mode = #tpu.pipeline_mode<synchronous>, transform_indices = @transform_7, window_bounds = array<i64: 128, 128>}, {pipeline_mode = #tpu.pipeline_mode<synchronous>, transform_indices = @transform_8, window_bounds = array<i64: 128, 128>}, {pipeline_mode = #tpu.pipeline_mode<synchronous>, transform_indices = @transform_9, window_bounds = array<i64: 1, 128>}, {pipeline_mode = #tpu.pipeline_mode<synchronous>, transform_indices = @transform_10, window_bounds = array<i64: 128, 128>}, {pipeline_mode = #tpu.pipeline_mode<synchronous>, transform_indices = @transform_11, window_bounds = array<i64: 128, 128>}, {pipeline_mode = #tpu.pipeline_mode<synchronous>, transform_indices = @transform_12, window_bounds = array<i64: 1, 128>}, {pipeline_mode = #tpu.pipeline_mode<synchronous>, transform_indices = @transform_13, window_bounds = array<i64: 128, 128>}]} {
    %c0 = arith.constant 0 : index
    %c0_0 = arith.constant 0 : index
    %0 = vector.load %arg4[%c0, %c0_0] : memref<128x128xbf16, #tpu.memory_space<vmem>>, vector<128x128xbf16>
    %c0_1 = arith.constant 0 : index
    %c0_2 = arith.constant 0 : index
    %1 = vector.load %arg1[%c0_1, %c0_2] : memref<128x128xbf16, #tpu.memory_space<vmem>>, vector<128x128xbf16>
    %cst = arith.constant dense<0.000000e+00> : vector<128x128xf32>
    %2 = tpu.matmul %1, %0, %cst {dimension_numbers = #tpu.dot_dimension_numbers<[1], [0], [0], [1], [0, 0, 1, 1], [], []>} : vector<128x128xbf16>, vector<128x128xbf16>, vector<128x128xf32> -> vector<128x128xf32>
    %c0_3 = arith.constant 0 : index
    %c0_4 = arith.constant 0 : index
    %3 = vector.load %arg5[%c0_3, %c0_4] : memref<128x128xbf16, #tpu.memory_space<vmem>>, vector<128x128xbf16>
    %cst_5 = arith.constant dense<0.000000e+00> : vector<128x128xf32>
    %4 = tpu.matmul %0, %3, %cst_5 {dimension_numbers = #tpu.dot_dimension_numbers<[1], [0], [0], [1], [0, 0, 1, 1], [], []>} : vector<128x128xbf16>, vector<128x128xbf16>, vector<128x128xf32> -> vector<128x128xf32>
    %5 = arith.truncf %2 : vector<128x128xf32> to vector<128x128xbf16>
    %c0_6 = arith.constant 0 : index
    %c0_7 = arith.constant 0 : index
    %6 = vector.load %arg6[%c0_6, %c0_7] : memref<128x128xbf16, #tpu.memory_space<vmem>>, vector<128x128xbf16>
    %cst_8 = arith.constant dense<0.000000e+00> : vector<128x128xf32>
    %7 = tpu.matmul %5, %6, %cst_8 {dimension_numbers = #tpu.dot_dimension_numbers<[1], [0], [0], [1], [0, 0, 1, 1], [], []>} : vector<128x128xbf16>, vector<128x128xbf16>, vector<128x128xf32> -> vector<128x128xf32>
    %8 = arith.addf %4, %7 : vector<128x128xf32>
    %c0_9 = arith.constant 0 : index
    %c0_10 = arith.constant 0 : index
    %9 = vector.load %arg7[%c0_9, %c0_10] : memref<1x128xf32, #tpu.memory_space<vmem>>, vector<1x128xf32>
    %10 = vector.broadcast %9 : vector<1x128xf32> to vector<128x128xf32>
    %11 = arith.addf %8, %10 : vector<128x128xf32>
    %cst_11 = arith.constant 0.000000e+00 : f32
    %12 = vector.broadcast %cst_11 : f32 to vector<128x128xf32>
    %13 = arith.maximumf %11, %12 : vector<128x128xf32>
    %14 = arith.truncf %13 : vector<128x128xf32> to vector<128x128xbf16>
    %c0_12 = arith.constant 0 : index
    %c0_13 = arith.constant 0 : index
    %15 = vector.load %arg2[%c0_12, %c0_13] : memref<128x128xbf16, #tpu.memory_space<vmem>>, vector<128x128xbf16>
    %cst_14 = arith.constant dense<0.000000e+00> : vector<128x128xf32>
    %16 = tpu.matmul %15, %14, %cst_14 {dimension_numbers = #tpu.dot_dimension_numbers<[1], [0], [0], [1], [0, 0, 1, 1], [], []>} : vector<128x128xbf16>, vector<128x128xbf16>, vector<128x128xf32> -> vector<128x128xf32>
    %c0_15 = arith.constant 0 : index
    %c0_16 = arith.constant 0 : index
    %17 = vector.load %arg8[%c0_15, %c0_16] : memref<128x128xbf16, #tpu.memory_space<vmem>>, vector<128x128xbf16>
    %cst_17 = arith.constant dense<0.000000e+00> : vector<128x128xf32>
    %18 = tpu.matmul %14, %17, %cst_17 {dimension_numbers = #tpu.dot_dimension_numbers<[1], [0], [0], [1], [0, 0, 1, 1], [], []>} : vector<128x128xbf16>, vector<128x128xbf16>, vector<128x128xf32> -> vector<128x128xf32>
    %19 = arith.truncf %16 : vector<128x128xf32> to vector<128x128xbf16>
    %c0_18 = arith.constant 0 : index
    %c0_19 = arith.constant 0 : index
    %20 = vector.load %arg9[%c0_18, %c0_19] : memref<128x128xbf16, #tpu.memory_space<vmem>>, vector<128x128xbf16>
    %cst_20 = arith.constant dense<0.000000e+00> : vector<128x128xf32>
    %21 = tpu.matmul %19, %20, %cst_20 {dimension_numbers = #tpu.dot_dimension_numbers<[1], [0], [0], [1], [0, 0, 1, 1], [], []>} : vector<128x128xbf16>, vector<128x128xbf16>, vector<128x128xf32> -> vector<128x128xf32>
    %22 = arith.addf %18, %21 : vector<128x128xf32>
    %c0_21 = arith.constant 0 : index
    %c0_22 = arith.constant 0 : index
    %23 = vector.load %arg10[%c0_21, %c0_22] : memref<1x128xf32, #tpu.memory_space<vmem>>, vector<1x128xf32>
    %24 = vector.broadcast %23 : vector<1x128xf32> to vector<128x128xf32>
    %25 = arith.addf %22, %24 : vector<128x128xf32>
    %cst_23 = arith.constant 0.000000e+00 : f32
    %26 = vector.broadcast %cst_23 : f32 to vector<128x128xf32>
    %27 = arith.maximumf %25, %26 : vector<128x128xf32>
    %28 = arith.truncf %27 : vector<128x128xf32> to vector<128x128xbf16>
    %c0_24 = arith.constant 0 : index
    %c0_25 = arith.constant 0 : index
    %29 = vector.load %arg3[%c0_24, %c0_25] : memref<128x128xbf16, #tpu.memory_space<vmem>>, vector<128x128xbf16>
    %cst_26 = arith.constant dense<0.000000e+00> : vector<128x128xf32>
    %30 = tpu.matmul %29, %28, %cst_26 {dimension_numbers = #tpu.dot_dimension_numbers<[1], [0], [0], [1], [0, 0, 1, 1], [], []>} : vector<128x128xbf16>, vector<128x128xbf16>, vector<128x128xf32> -> vector<128x128xf32>
    %c0_27 = arith.constant 0 : index
    %c0_28 = arith.constant 0 : index
    %31 = vector.load %arg11[%c0_27, %c0_28] : memref<128x128xbf16, #tpu.memory_space<vmem>>, vector<128x128xbf16>
    %cst_29 = arith.constant dense<0.000000e+00> : vector<128x128xf32>
    %32 = tpu.matmul %28, %31, %cst_29 {dimension_numbers = #tpu.dot_dimension_numbers<[1], [0], [0], [1], [0, 0, 1, 1], [], []>} : vector<128x128xbf16>, vector<128x128xbf16>, vector<128x128xf32> -> vector<128x128xf32>
    %33 = arith.truncf %30 : vector<128x128xf32> to vector<128x128xbf16>
    %c0_30 = arith.constant 0 : index
    %c0_31 = arith.constant 0 : index
    %34 = vector.load %arg12[%c0_30, %c0_31] : memref<128x128xbf16, #tpu.memory_space<vmem>>, vector<128x128xbf16>
    %cst_32 = arith.constant dense<0.000000e+00> : vector<128x128xf32>
    %35 = tpu.matmul %33, %34, %cst_32 {dimension_numbers = #tpu.dot_dimension_numbers<[1], [0], [0], [1], [0, 0, 1, 1], [], []>} : vector<128x128xbf16>, vector<128x128xbf16>, vector<128x128xf32> -> vector<128x128xf32>
    %36 = arith.addf %32, %35 : vector<128x128xf32>
    %c0_33 = arith.constant 0 : index
    %c0_34 = arith.constant 0 : index
    %37 = vector.load %arg13[%c0_33, %c0_34] : memref<1x128xf32, #tpu.memory_space<vmem>>, vector<1x128xf32>
    %38 = vector.broadcast %37 : vector<1x128xf32> to vector<128x128xf32>
    %39 = arith.addf %36, %38 : vector<128x128xf32>
    %c0_35 = arith.constant 0 : index
    %c0_36 = arith.constant 0 : index
    %40 = vector.load %arg14[%c0_35, %c0_36] : memref<128x128xf32, #tpu.memory_space<vmem>>, vector<128x128xf32>
    tpu.vector_store %arg14[%c0_35, %c0_36], %39 {strides = array<i32>} : memref<128x128xf32, #tpu.memory_space<vmem>>, vector<128x128xf32>,
    return
  }
  func.func @transform_0(%arg0: i32) -> (i32, i32) {
    %c0_i32 = arith.constant 0 : i32
    %c0_i32_0 = arith.constant 0 : i32
    %c0_i32_1 = arith.constant 0 : i32
    return %c0_i32, %c0_i32_0 : i32, i32
  }
  func.func @transform_1(%arg0: i32) -> (i32, i32) {
    %c0_i32 = arith.constant 0 : i32
    %c0_i32_0 = arith.constant 0 : i32
    %c0_i32_1 = arith.constant 0 : i32
    return %c0_i32, %c0_i32_0 : i32, i32
  }
  func.func @transform_2(%arg0: i32) -> (i32, i32) {
    %c0_i32 = arith.constant 0 : i32
    %c0_i32_0 = arith.constant 0 : i32
    %c0_i32_1 = arith.constant 0 : i32
    return %c0_i32, %c0_i32_0 : i32, i32
  }
  func.func @transform_3(%arg0: i32) -> (i32, i32) {
    %c0_i32 = arith.constant 0 : i32
    %c0_i32_0 = arith.constant 0 : i32
    %c0_i32_1 = arith.constant 0 : i32
    return %c0_i32, %c0_i32_0 : i32, i32
  }
  func.func @transform_4(%arg0: i32) -> (i32, i32) {
    %c0_i32 = arith.constant 0 : i32
    %c0_i32_0 = arith.constant 0 : i32
    %c0_i32_1 = arith.constant 0 : i32
    return %c0_i32, %c0_i32_0 : i32, i32
  }
  func.func @transform_5(%arg0: i32) -> (i32, i32) {
    %c0_i32 = arith.constant 0 : i32
    %c0_i32_0 = arith.constant 0 : i32
    %c0_i32_1 = arith.constant 0 : i32
    return %c0_i32, %c0_i32_0 : i32, i32
  }
  func.func @transform_6(%arg0: i32) -> (i32, i32) {
    %c0_i32 = arith.constant 0 : i32
    %c0_i32_0 = arith.constant 0 : i32
    %c0_i32_1 = arith.constant 0 : i32
    return %c0_i32, %c0_i32_0 : i32, i32
  }
  func.func @transform_7(%arg0: i32) -> (i32, i32) {
    %c0_i32 = arith.constant 0 : i32
    %c0_i32_0 = arith.constant 0 : i32
    %c0_i32_1 = arith.constant 0 : i32
    return %c0_i32, %c0_i32_0 : i32, i32
  }
  func.func @transform_8(%arg0: i32) -> (i32, i32) {
    %c0_i32 = arith.constant 0 : i32
    %c0_i32_0 = arith.constant 0 : i32
    %c0_i32_1 = arith.constant 0 : i32
    return %c0_i32, %c0_i32_0 : i32, i32
  }
  func.func @transform_9(%arg0: i32) -> (i32, i32) {
    %c0_i32 = arith.constant 0 : i32
    %c0_i32_0 = arith.constant 0 : i32
    %c0_i32_1 = arith.constant 0 : i32
    return %c0_i32, %c0_i32_0 : i32, i32
  }
  func.func @transform_10(%arg0: i32) -> (i32, i32) {
    %c0_i32 = arith.constant 0 : i32
    %c0_i32_0 = arith.constant 0 : i32
    %c0_i32_1 = arith.constant 0 : i32
    return %c0_i32, %c0_i32_0 : i32, i32
  }
  func.func @transform_11(%arg0: i32) -> (i32, i32) {
    %c0_i32 = arith.constant 0 : i32
    %c0_i32_0 = arith.constant 0 : i32
    %c0_i32_1 = arith.constant 0 : i32
    return %c0_i32, %c0_i32_0 : i32, i32
  }
  func.func @transform_12(%arg0: i32) -> (i32, i32) {
    %c0_i32 = arith.constant 0 : i32
    %c0_i32_0 = arith.constant 0 : i32
    %c0_i32_1 = arith.constant 0 : i32
    return %c0_i32, %c0_i32_0 : i32, i32
  }
  func.func @transform_13(%arg0: i32) -> (i32, i32) {
    %c0_i32 = arith.constant 0 : i32
    %c0_i32_0 = arith.constant 0 : i32
    %c0_i32_1 = arith.constant 0 : i32
    return %c0_i32, %c0_i32_0 : i32, i32
  }
}

</mosaic_0001>

<llo_original>
// kernel: tpu_custom_call.1
$region0: #{tpu_custom_call.1}
  #allocation0 [shape = 'u32[]', space=smem, size = 0x4, offset = 0x4, fixed_abs, tag = 'smem constant byte address 0x4 - core index']
  #allocation1 [shape = 'u32[144,128]{1,0:T(1,128)}', space=vmem, size = 0x12000, scoped, tag = 'internal scratch']
  %s0 = inlined_call_operand.hbm [shape: bf16[128,128], index: 0, kind: input, shape index: {}]
  %s1 = inlined_call_operand.hbm [shape: bf16[128,128], index: 1, kind: input, shape index: {}]
  %s2 = inlined_call_operand.hbm [shape: bf16[128,128], index: 2, kind: input, shape index: {}]
  %s3 = inlined_call_operand.hbm [shape: bf16[128,128], index: 3, kind: input, shape index: {}]
  %s4 = inlined_call_operand.hbm [shape: bf16[128,128], index: 4, kind: input, shape index: {}]
  %s5 = inlined_call_operand.hbm [shape: bf16[128,128], index: 5, kind: input, shape index: {}]
  %s6 = inlined_call_operand.vmem [shape: f32[1,128], index: 6, kind: input, shape index: {}]
  %s7 = inlined_call_operand.hbm [shape: bf16[128,128], index: 7, kind: input, shape index: {}]
  %s8 = inlined_call_operand.hbm [shape: bf16[128,128], index: 8, kind: input, shape index: {}]
  %s9 = inlined_call_operand.vmem [shape: f32[1,128], index: 9, kind: input, shape index: {}]
  %s10 = inlined_call_operand.hbm [shape: bf16[128,128], index: 10, kind: input, shape index: {}]
  %s11 = inlined_call_operand.hbm [shape: bf16[128,128], index: 11, kind: input, shape index: {}]
  %s12 = inlined_call_operand.vmem [shape: f32[1,128], index: 12, kind: input, shape index: {}]
  %s13 = inlined_call_operand.hbm [shape: f32[128,128], index: 13, kind: output, shape index: {}]
  %s14 = sld [smem:[#allocation0]]
  $region102: #{tpu_custom_call.1} parent=0
    _
  %s16 = ssub.s32 1, %s14
  %s17 = scalar_select 0, %s16, %s14
  $region1: #{tpu_custom_call.1} parent=0
    #allocation2 [shape = 'u8[32768]{0}', space=vmem, size = 0x8000, scoped, tag = 'input window, operand 0, single buffered']
    #allocation3 [shape = 's32[1]{0}', space=sflag, size = 0x4, scoped, tag = 'scoped memory for tpu_custom_call.1']
    #allocation4 [shape = 's32[1]{0}', space=sflag, size = 0x4, scoped, tag = 'scoped memory for tpu_custom_call.1']
    #allocation5 [shape = 'u8[32768]{0}', space=vmem, size = 0x8000, scoped, tag = 'input window, operand 1, single buffered']
    #allocation6 [shape = 's32[1]{0}', space=sflag, size = 0x4, scoped, tag = 'scoped memory for tpu_custom_call.1']
    #allocation7 [shape = 'u8[32768]{0}', space=vmem, size = 0x8000, scoped, tag = 'input window, operand 2, single buffered']
    #allocation8 [shape = 'u8[32768]{0}', space=vmem, size = 0x8000, scoped, tag = 'input window, operand 3, single buffered']
    #allocation9 [shape = 's32[1]{0}', space=sflag, size = 0x4, scoped, tag = 'scoped memory for tpu_custom_call.1']
    #allocation10 [shape = 'u8[32768]{0}', space=vmem, size = 0x8000, scoped, tag = 'input window, operand 4, single buffered']
    #allocation11 [shape = 'u8[32768]{0}', space=vmem, size = 0x8000, scoped, tag = 'input window, operand 5, single buffered']
    #allocation12 [shape = 's32[1]{0}', space=sflag, size = 0x4, scoped, tag = 'scoped memory for tpu_custom_call.1']
    #allocation13 [shape = 'u8[32768]{0}', space=vmem, size = 0x8000, scoped, tag = 'input window, operand 7, single buffered']
    #allocation14 [shape = 'u8[32768]{0}', space=vmem, size = 0x8000, scoped, tag = 'input window, operand 8, single buffered']
    #allocation15 [shape = 's32[1]{0}', space=sflag, size = 0x4, scoped, tag = 'scoped memory for tpu_custom_call.1']
    #allocation16 [shape = 'u8[32768]{0}', space=vmem, size = 0x8000, scoped, tag = 'input window, operand 10, single buffered']
    #allocation17 [shape = 'u8[32768]{0}', space=vmem, size = 0x8000, scoped, tag = 'input window, operand 11, single buffered']
    #allocation18 [shape = 's32[1]{0}', space=sflag, size = 0x4, scoped, tag = 'scoped memory for tpu_custom_call.1']
    #allocation19 [shape = 'u8[65536]{0}', space=vmem, size = 0x10000, scoped, tag = 'output window, operand 0, single buffered']
    %18 = vsyncpa [#allocation3], 0
    %19 = vsyncpa [#allocation6], 0
    %20 = vsyncpa [#allocation9], 0
    %21 = vsyncpa [#allocation12], 0
    %22 = vsyncpa [#allocation15], 0
    %23 = vsyncpa [#allocation18], 0
    %24 = vsyncpa [#allocation4], 0
    // Predicated region
    $region2: #{tpu_custom_call.1} parent=1 // pred_check
      _
    $region3: #{tpu_custom_call.1} parent=1 // pred_check_branch
      %26 = sbr.rel (0) target = $region5
    $region4: #{tpu_custom_call.1} parent=1 // pred_region
      %s28 = ssub.s32 1024, 1024
      %29 = vsyncadd [#allocation3], %s28
      %s30 = sshll.u32 [#allocation2], 4
      %s31 = int_to_ptr.vmem [resolvable:$true] %s30
      %36 = dma.hbm_to_vmem [thread:$0]  %s0, 1024, %s31, [#allocation3], 64, 64, 4
    $region5: #{tpu_custom_call.1} parent=1 // pred_fallthru
      _
    // Predicated region
    $region6: #{tpu_custom_call.1} parent=1 // pred_check
      _
    $region7: #{tpu_custom_call.1} parent=1 // pred_check_branch
      %38 = sbr.rel (0) target = $region9
    $region8: #{tpu_custom_call.1} parent=1 // pred_region
      %s40 = ssub.s32 1024, 1024
      %41 = vsyncadd [#allocation6], %s40
      %s42 = sshll.u32 [#allocation5], 4
      %s43 = int_to_ptr.vmem [resolvable:$true] %s42
      %48 = dma.hbm_to_vmem [thread:$0]  %s1, 1024, %s43, [#allocation6], 64, 64, 4
    $region9: #{tpu_custom_call.1} parent=1 // pred_fallthru
      _
    // Predicated region
    $region10: #{tpu_custom_call.1} parent=1 // pred_check
      _
    $region11: #{tpu_custom_call.1} parent=1 // pred_check_branch
      %50 = sbr.rel (0) target = $region13
    $region12: #{tpu_custom_call.1} parent=1 // pred_region
      %s52 = ssub.s32 1024, 1024
      %53 = vsyncadd [#allocation6], %s52
      %s54 = sshll.u32 [#allocation7], 4
      %s55 = int_to_ptr.vmem [resolvable:$true] %s54
      %60 = dma.hbm_to_vmem [thread:$0]  %s2, 1024, %s55, [#allocation6], 64, 64, 4
    $region13: #{tpu_custom_call.1} parent=1 // pred_fallthru
      _
    // Predicated region
    $region14: #{tpu_custom_call.1} parent=1 // pred_check
      _
    $region15: #{tpu_custom_call.1} parent=1 // pred_check_branch
      %62 = sbr.rel (0) target = $region17
    $region16: #{tpu_custom_call.1} parent=1 // pred_region
      %s64 = ssub.s32 1024, 1024
      %65 = vsyncadd [#allocation9], %s64
      %s66 = sshll.u32 [#allocation8], 4
      %s67 = int_to_ptr.vmem [resolvable:$true] %s66
      %72 = dma.hbm_to_vmem [thread:$0]  %s3, 1024, %s67, [#allocation9], 64, 64, 4
    $region17: #{tpu_custom_call.1} parent=1 // pred_fallthru
      _
    // Predicated region
    $region18: #{tpu_custom_call.1} parent=1 // pred_check
      _
    $region19: #{tpu_custom_call.1} parent=1 // pred_check_branch
      %74 = sbr.rel (0) target = $region21
    $region20: #{tpu_custom_call.1} parent=1 // pred_region
      %s76 = ssub.s32 1024, 1024
      %77 = vsyncadd [#allocation9], %s76
      %s78 = sshll.u32 [#allocation10], 4
      %s79 = int_to_ptr.vmem [resolvable:$true] %s78
      %84 = dma.hbm_to_vmem [thread:$0]  %s4, 1024, %s79, [#allocation9], 64, 64, 4
    $region21: #{tpu_custom_call.1} parent=1 // pred_fallthru
      _
    // Predicated region
    $region22: #{tpu_custom_call.1} parent=1 // pred_check
      _
    $region23: #{tpu_custom_call.1} parent=1 // pred_check_branch
      %86 = sbr.rel (0) target = $region25
    $region24: #{tpu_custom_call.1} parent=1 // pred_region
      %s88 = ssub.s32 1024, 1024
      %89 = vsyncadd [#allocation12], %s88
      %s90 = sshll.u32 [#allocation11], 4
      %s91 = int_to_ptr.vmem [resolvable:$true] %s90
      %96 = dma.hbm_to_vmem [thread:$0]  %s5, 1024, %s91, [#allocation12], 64, 64, 4
    $region25: #{tpu_custom_call.1} parent=1 // pred_fallthru
      _
    // Predicated region
    $region26: #{tpu_custom_call.1} parent=1 // pred_check
      _
    $region27: #{tpu_custom_call.1} parent=1 // pred_check_branch
      %98 = sbr.rel (0) target = $region29
    $region28: #{tpu_custom_call.1} parent=1 // pred_region
      _
    $region29: #{tpu_custom_call.1} parent=1 // pred_fallthru
      _
    // Predicated region
    $region30: #{tpu_custom_call.1} parent=1 // pred_check
      _
    $region31: #{tpu_custom_call.1} parent=1 // pred_check_branch
      %100 = sbr.rel (0) target = $region33
    $region32: #{tpu_custom_call.1} parent=1 // pred_region
      %s102 = ssub.s32 1024, 1024
      %103 = vsyncadd [#allocation12], %s102
      %s104 = sshll.u32 [#allocation13], 4
      %s105 = int_to_ptr.vmem [resolvable:$true] %s104
      %110 = dma.hbm_to_vmem [thread:$0]  %s7, 1024, %s105, [#allocation12], 64, 64, 4
    $region33: #{tpu_custom_call.1} parent=1 // pred_fallthru
      _
    // Predicated region
    $region34: #{tpu_custom_call.1} parent=1 // pred_check
      _
    $region35: #{tpu_custom_call.1} parent=1 // pred_check_branch
      %112 = sbr.rel (0) target = $region37
    $region36: #{tpu_custom_call.1} parent=1 // pred_region
      %s114 = ssub.s32 1024, 1024
      %115 = vsyncadd [#allocation15], %s114
      %s116 = sshll.u32 [#allocation14], 4
      %s117 = int_to_ptr.vmem [resolvable:$true] %s116
      %122 = dma.hbm_to_vmem [thread:$0]  %s8, 1024, %s117, [#allocation15], 64, 64, 4
    $region37: #{tpu_custom_call.1} parent=1 // pred_fallthru
      _
    // Predicated region
    $region38: #{tpu_custom_call.1} parent=1 // pred_check
      _
    $region39: #{tpu_custom_call.1} parent=1 // pred_check_branch
      %124 = sbr.rel (0) target = $region41
    $region40: #{tpu_custom_call.1} parent=1 // pred_region
      _
    $region41: #{tpu_custom_call.1} parent=1 // pred_fallthru
      _
    // Predicated region
    $region42: #{tpu_custom_call.1} parent=1 // pred_check
      _
    $region43: #{tpu_custom_call.1} parent=1 // pred_check_branch
      %126 = sbr.rel (0) target = $region45
    $region44: #{tpu_custom_call.1} parent=1 // pred_region
      %s128 = ssub.s32 1024, 1024
      %129 = vsyncadd [#allocation15], %s128
      %s130 = sshll.u32 [#allocation16], 4
      %s131 = int_to_ptr.vmem [resolvable:$true] %s130
      %136 = dma.hbm_to_vmem [thread:$0]  %s10, 1024, %s131, [#allocation15], 64, 64, 4
    $region45: #{tpu_custom_call.1} parent=1 // pred_fallthru
      _
    // Predicated region
    $region46: #{tpu_custom_call.1} parent=1 // pred_check
      _
    $region47: #{tpu_custom_call.1} parent=1 // pred_check_branch
      %138 = sbr.rel (0) target = $region49
    $region48: #{tpu_custom_call.1} parent=1 // pred_region
      %s140 = ssub.s32 1024, 1024
      %141 = vsyncadd [#allocation18], %s140
      %s142 = sshll.u32 [#allocation17], 4
      %s143 = int_to_ptr.vmem [resolvable:$true] %s142
      %148 = dma.hbm_to_vmem [thread:$0]  %s11, 1024, %s143, [#allocation18], 64, 64, 4
    $region49: #{tpu_custom_call.1} parent=1 // pred_fallthru
      _
    // Predicated region
    $region50: #{tpu_custom_call.1} parent=1 // pred_check
      _
    $region51: #{tpu_custom_call.1} parent=1 // pred_check_branch
      %150 = sbr.rel (0) target = $region53
    $region52: #{tpu_custom_call.1} parent=1 // pred_region
      _
    $region53: #{tpu_custom_call.1} parent=1 // pred_fallthru
      _
    // Predicated region
    $region54: #{tpu_custom_call.1} parent=1 // pred_check
      _
    $region55: #{tpu_custom_call.1} parent=1 // pred_check_branch
      %152 = sbr.rel (0) target = $region57
    $region56: #{tpu_custom_call.1} parent=1 // pred_region
      %153 = dma.done [#allocation3], 1024
    $region57: #{tpu_custom_call.1} parent=1 // pred_fallthru
      _
    // Predicated region
    $region58: #{tpu_custom_call.1} parent=1 // pred_check
      _
    $region59: #{tpu_custom_call.1} parent=1 // pred_check_branch
      %155 = sbr.rel (0) target = $region61
    $region60: #{tpu_custom_call.1} parent=1 // pred_region
      %156 = dma.done [#allocation6], 1024
    $region61: #{tpu_custom_call.1} parent=1 // pred_fallthru
      _
    // Predicated region
    $region62: #{tpu_custom_call.1} parent=1 // pred_check
      _
    $region63: #{tpu_custom_call.1} parent=1 // pred_check_branch
      %158 = sbr.rel (0) target = $region65
    $region64: #{tpu_custom_call.1} parent=1 // pred_region
      %159 = dma.done [#allocation6], 1024
    $region65: #{tpu_custom_call.1} parent=1 // pred_fallthru
      _
    // Predicated region
    $region66: #{tpu_custom_call.1} parent=1 // pred_check
      _
    $region67: #{tpu_custom_call.1} parent=1 // pred_check_branch
      %161 = sbr.rel (0) target = $region69
    $region68: #{tpu_custom_call.1} parent=1 // pred_region
      %162 = dma.done [#allocation9], 1024
    $region69: #{tpu_custom_call.1} parent=1 // pred_fallthru
      _
    // Predicated region
    $region70: #{tpu_custom_call.1} parent=1 // pred_check
      _
    $region71: #{tpu_custom_call.1} parent=1 // pred_check_branch
      %164 = sbr.rel (0) target = $region73
    $region72: #{tpu_custom_call.1} parent=1 // pred_region
      %165 = dma.done [#allocation9], 1024
    $region73: #{tpu_custom_call.1} parent=1 // pred_fallthru
      _
    // Predicated region
    $region74: #{tpu_custom_call.1} parent=1 // pred_check
      _
    $region75: #{tpu_custom_call.1} parent=1 // pred_check_branch
      %167 = sbr.rel (0) target = $region77
    $region76: #{tpu_custom_call.1} parent=1 // pred_region
      %168 = dma.done [#allocation12], 1024
    $region77: #{tpu_custom_call.1} parent=1 // pred_fallthru
      _
    // Predicated region
    $region78: #{tpu_custom_call.1} parent=1 // pred_check
      _
    $region79: #{tpu_custom_call.1} parent=1 // pred_check_branch
      %170 = sbr.rel (0) target = $region81
    $region80: #{tpu_custom_call.1} parent=1 // pred_region
      %171 = dma.done [#allocation12], 1024
    $region81: #{tpu_custom_call.1} parent=1 // pred_fallthru
      _
    // Predicated region
    $region82: #{tpu_custom_call.1} parent=1 // pred_check
      _
    $region83: #{tpu_custom_call.1} parent=1 // pred_check_branch
      %173 = sbr.rel (0) target = $region85
    $region84: #{tpu_custom_call.1} parent=1 // pred_region
      %174 = dma.done [#allocation15], 1024
    $region85: #{tpu_custom_call.1} parent=1 // pred_fallthru
      _
    // Predicated region
    $region86: #{tpu_custom_call.1} parent=1 // pred_check
      _
    $region87: #{tpu_custom_call.1} parent=1 // pred_check_branch
      %176 = sbr.rel (0) target = $region89
    $region88: #{tpu_custom_call.1} parent=1 // pred_region
      %177 = dma.done [#allocation15], 1024
    $region89: #{tpu_custom_call.1} parent=1 // pred_fallthru
      _
    // Predicated region
    $region90: #{tpu_custom_call.1} parent=1 // pred_check
      _
    $region91: #{tpu_custom_call.1} parent=1 // pred_check_branch
      %179 = sbr.rel (0) target = $region93
    $region92: #{tpu_custom_call.1} parent=1 // pred_region
      %180 = dma.done [#allocation18], 1024
    $region93: #{tpu_custom_call.1} parent=1 // pred_fallthru
      _
    %v182 = vld [vmem:[#allocation8] sm:$0xf]
    %v183 = vld [vmem:[#allocation8 + $0x4] sm:$0xf]
    %v184 = vld [vmem:[#allocation8 + $0x8] sm:$0xf]
    %v185 = vld [vmem:[#allocation8 + $0xc] sm:$0xf]
    %v186 = vld [vmem:[#allocation8 + $0x10] sm:$0xf]
    %v187 = vld [vmem:[#allocation8 + $0x14] sm:$0xf]
    %v188 = vld [vmem:[#allocation8 + $0x18] sm:$0xf]
    %v189 = vld [vmem:[#allocation8 + $0x1c] sm:$0xf]
    %v190 = vld [vmem:[#allocation8 + $0x20] sm:$0xf]
    %v191 = vld [vmem:[#allocation8 + $0x24] sm:$0xf]
    %v192 = vld [vmem:[#allocation8 + $0x28] sm:$0xf]
    %v193 = vld [vmem:[#allocation8 + $0x2c] sm:$0xf]
    %v194 = vld [vmem:[#allocation8 + $0x30] sm:$0xf]
    %v195 = vld [vmem:[#allocation8 + $0x34] sm:$0xf]
    %v196 = vld [vmem:[#allocation8 + $0x38] sm:$0xf]
    %v197 = vld [vmem:[#allocation8 + $0x3c] sm:$0xf]
    %v198 = vld [vmem:[#allocation2] sm:$0xf]
    %v199 = vld [vmem:[#allocation2 + $0x4] sm:$0xf]
    %v200 = vld [vmem:[#allocation2 + $0x8] sm:$0xf]
    %v201 = vld [vmem:[#allocation2 + $0xc] sm:$0xf]
    %v202 = vld [vmem:[#allocation2 + $0x10] sm:$0xf]
    %v203 = vld [vmem:[#allocation2 + $0x14] sm:$0xf]
    %v204 = vld [vmem:[#allocation2 + $0x18] sm:$0xf]
    %v205 = vld [vmem:[#allocation2 + $0x1c] sm:$0xf]
    %v206 = vld [vmem:[#allocation2 + $0x20] sm:$0xf]
    %v207 = vld [vmem:[#allocation2 + $0x24] sm:$0xf]
    %v208 = vld [vmem:[#allocation2 + $0x28] sm:$0xf]
    %v209 = vld [vmem:[#allocation2 + $0x2c] sm:$0xf]
    %v210 = vld [vmem:[#allocation2 + $0x30] sm:$0xf]
    %v211 = vld [vmem:[#allocation2 + $0x34] sm:$0xf]
    %v212 = vld [vmem:[#allocation2 + $0x38] sm:$0xf]
    %v213 = vld [vmem:[#allocation2 + $0x3c] sm:$0xf]
    %v230 = vunpack.c.l.b16 %v198
    %v231 = vunpack.c.l.b16 %v199
    %v232 = vunpack.c.l.b16 %v200
    %v233 = vunpack.c.l.b16 %v201
    %v234 = vunpack.c.l.b16 %v202
    %v235 = vunpack.c.l.b16 %v203
    %v236 = vunpack.c.l.b16 %v204
    %v237 = vunpack.c.l.b16 %v205
    %v238 = vunpack.c.l.b16 %v206
    %v239 = vunpack.c.l.b16 %v207
    %v240 = vunpack.c.l.b16 %v208
    %v241 = vunpack.c.l.b16 %v209
    %v242 = vunpack.c.l.b16 %v210
    %v243 = vunpack.c.l.b16 %v211
    %v244 = vunpack.c.l.b16 %v212
    %v245 = vunpack.c.l.b16 %v213
    %v246 = vpack.c.b16 %v231, %v230
    %v247 = vpack.c.b16 %v233, %v232
    %v248 = vpack.c.b16 %v235, %v234
    %v249 = vpack.c.b16 %v237, %v236
    %v250 = vpack.c.b16 %v239, %v238
    %v251 = vpack.c.b16 %v241, %v240
    %v252 = vpack.c.b16 %v243, %v242
    %v253 = vpack.c.b16 %v245, %v244
    %v278 = vunpack.c.l.b16 %v182
    %v279 = vunpack.c.l.b16 %v183
    %v280 = vunpack.c.l.b16 %v184
    %v281 = vunpack.c.l.b16 %v185
    %v282 = vunpack.c.l.b16 %v186
    %v283 = vunpack.c.l.b16 %v187
    %v284 = vunpack.c.l.b16 %v188
    %v285 = vunpack.c.l.b16 %v189
    %v286 = vunpack.c.l.b16 %v190
    %v287 = vunpack.c.l.b16 %v191
    %v288 = vunpack.c.l.b16 %v192
    %v289 = vunpack.c.l.b16 %v193
    %v290 = vunpack.c.l.b16 %v194
    %v291 = vunpack.c.l.b16 %v195
    %v292 = vunpack.c.l.b16 %v196
    %v293 = vunpack.c.l.b16 %v197
    %v294 = vpack.c.b16 %v279, %v278
    %v295 = vpack.c.b16 %v281, %v280
    %v296 = vpack.c.b16 %v283, %v282
    %v297 = vpack.c.b16 %v285, %v284
    %v298 = vpack.c.b16 %v287, %v286
    %v299 = vpack.c.b16 %v289, %v288
    %v300 = vpack.c.b16 %v291, %v290
    %v301 = vpack.c.b16 %v293, %v292
    %310 = vmatprep.subr.bf16.mxu0 0
    %311 = vmatpush1.bf16.msra.mxu0 %v294
    %312 = vmatprep.subr.bf16.mxu0 0
    %313 = vmatpush1.bf16.msra.mxu0 %v295
    %314 = vmatprep.subr.bf16.mxu0 0
    %315 = vmatpush1.bf16.msra.mxu0 %v296
    %316 = vmatprep.subr.bf16.mxu0 0
    %317 = vmatpush1.bf16.msra.mxu0 %v297
    %318 = vmatprep.subr.bf16.mxu0 0
    %319 = vmatpush1.bf16.msra.mxu0 %v298
    %320 = vmatprep.subr.bf16.mxu0 0
    %321 = vmatpush1.bf16.msra.mxu0 %v299
    %322 = vmatprep.subr.bf16.mxu0 0
    %323 = vmatpush1.bf16.msra.mxu0 %v300
    %324 = vmatprep.subr.bf16.mxu0 0
    %325 = vmatpush1.bf16.msra.mxu0 %v301
    %326 = vmatprep.subr.bf16.mxu0 0
    %327 = vmatpush1.bf16.msra.mxu0 0
    %328 = vmatprep.subr.bf16.mxu0 0
    %329 = vmatpush1.bf16.msra.mxu0 0
    %330 = vmatprep.subr.bf16.mxu0 0
    %331 = vmatpush1.bf16.msra.mxu0 0
    %332 = vmatprep.subr.bf16.mxu0 0
    %333 = vmatpush1.bf16.msra.mxu0 0
    %334 = vmatprep.subr.bf16.mxu0 0
    %335 = vmatpush1.bf16.msra.mxu0 0
    %336 = vmatprep.subr.bf16.mxu0 0
    %337 = vmatpush1.bf16.msra.mxu0 0
    %338 = vmatprep.subr.bf16.mxu0 0
    %339 = vmatpush1.bf16.msra.mxu0 0
    %340 = vmatprep.subr.bf16.mxu0 0
    %341 = vmatpush1.bf16.msra.mxu0 0
    %342 = vmatprep.mubr.bf16.mxu0 0
    %343 = vmatmul.mubr.bf16.gmra.mrb[0].mxu0 %v246
    %v344 = vpop.f32.mrb[0].mxu0
    %v345 = vadd.f32 0.0, %v344
    %v346 = vpop.f32.mrb[0].mxu0
    %v347 = vpop.f32.mrb[0].mxu0
    %v348 = vadd.f32 0.0, %v347
    %v349 = vpop.f32.mrb[0].mxu0
    %350 = vmatprep.mubr.bf16.mxu0 0
    %351 = vmatmul.mubr.bf16.gmra.mrb[0].mxu0 %v247
    %v352 = vpop.f32.mrb[0].mxu0
    %v353 = vadd.f32 0.0, %v352
    %v354 = vpop.f32.mrb[0].mxu0
    %v355 = vpop.f32.mrb[0].mxu0
    %v356 = vadd.f32 0.0, %v355
    %v357 = vpop.f32.mrb[0].mxu0
    %358 = vmatprep.mubr.bf16.mxu0 0
    %359 = vmatmul.mubr.bf16.gmra.mrb[0].mxu0 %v248
    %v360 = vpop.f32.mrb[0].mxu0
    %v361 = vadd.f32 0.0, %v360
    %v362 = vpop.f32.mrb[0].mxu0
    %v363 = vpop.f32.mrb[0].mxu0
    %v364 = vadd.f32 0.0, %v363
    %v365 = vpop.f32.mrb[0].mxu0
    %366 = vmatprep.mubr.bf16.mxu0 0
    %367 = vmatmul.mubr.bf16.gmra.mrb[0].mxu0 %v249
    %v368 = vpop.f32.mrb[0].mxu0
    %v369 = vadd.f32 0.0, %v368
    %v370 = vpop.f32.mrb[0].mxu0
    %v371 = vpop.f32.mrb[0].mxu0
    %v372 = vadd.f32 0.0, %v371
    %v373 = vpop.f32.mrb[0].mxu0
    %374 = vmatprep.mubr.bf16.mxu0 0
    %375 = vmatmul.mubr.bf16.gmra.mrb[0].mxu0 %v250
    %v376 = vpop.f32.mrb[0].mxu0
    %v377 = vadd.f32 0.0, %v376
    %v378 = vpop.f32.mrb[0].mxu0
    %v379 = vpop.f32.mrb[0].mxu0
    %v380 = vadd.f32 0.0, %v379
    %v381 = vpop.f32.mrb[0].mxu0
    %382 = vmatprep.mubr.bf16.mxu0 0
    %383 = vmatmul.mubr.bf16.gmra.mrb[0].mxu0 %v251
    %v384 = vpop.f32.mrb[0].mxu0
    %v385 = vadd.f32 0.0, %v384
    %v386 = vpop.f32.mrb[0].mxu0
    %v387 = vpop.f32.mrb[0].mxu0
    %v388 = vadd.f32 0.0, %v387
    %v389 = vpop.f32.mrb[0].mxu0
    %390 = vmatprep.mubr.bf16.mxu0 0
    %391 = vmatmul.mubr.bf16.gmra.mrb[0].mxu0 %v252
    %v392 = vpop.f32.mrb[0].mxu0
    %v393 = vadd.f32 0.0, %v392
    %v394 = vpop.f32.mrb[0].mxu0
    %v395 = vpop.f32.mrb[0].mxu0
    %v396 = vadd.f32 0.0, %v395
    %v397 = vpop.f32.mrb[0].mxu0
    %398 = vmatprep.mubr.bf16.mxu0 0
    %399 = vmatmul.mubr.bf16.gmra.mrb[0].mxu0 %v253
    %v400 = vpop.f32.mrb[0].mxu0
    %v401 = vadd.f32 0.0, %v400
    %v402 = vpop.f32.mrb[0].mxu0
    %v403 = vpop.f32.mrb[0].mxu0
    %v404 = vadd.f32 0.0, %v403
    %v405 = vpop.f32.mrb[0].mxu0
    %406 = vdwg.mxu0
    %v407 = vld [vmem:[#allocation10] sm:$0xf]
    %v408 = vld [vmem:[#allocation10 + $0x4] sm:$0xf]
    %v409 = vld [vmem:[#allocation10 + $0x8] sm:$0xf]
    %v410 = vld [vmem:[#allocation10 + $0xc] sm:$0xf]
    %v411 = vld [vmem:[#allocation10 + $0x10] sm:$0xf]
    %v412 = vld [vmem:[#allocation10 + $0x14] sm:$0xf]
    %v413 = vld [vmem:[#allocation10 + $0x18] sm:$0xf]
    %v414 = vld [vmem:[#allocation10 + $0x1c] sm:$0xf]
    %v415 = vld [vmem:[#allocation10 + $0x20] sm:$0xf]
    %v416 = vld [vmem:[#allocation10 + $0x24] sm:$0xf]
    %v417 = vld [vmem:[#allocation10 + $0x28] sm:$0xf]
    %v418 = vld [vmem:[#allocation10 + $0x2c] sm:$0xf]
    %v419 = vld [vmem:[#allocation10 + $0x30] sm:$0xf]
    %v420 = vld [vmem:[#allocation10 + $0x34] sm:$0xf]
    %v421 = vld [vmem:[#allocation10 + $0x38] sm:$0xf]
    %v422 = vld [vmem:[#allocation10 + $0x3c] sm:$0xf]
    %v423 = vpack.c.bf16 %v348, %v345
    %v424 = vpack.c.bf16 %v356, %v353
    %v425 = vpack.c.bf16 %v364, %v361
    %v426 = vpack.c.bf16 %v372, %v369
    %v427 = vpack.c.bf16 %v380, %v377
    %v428 = vpack.c.bf16 %v388, %v385
    %v429 = vpack.c.bf16 %v396, %v393
    %v430 = vpack.c.bf16 %v404, %v401
    %v431 = vld [vmem:[#allocation11] sm:$0xf]
    %v432 = vld [vmem:[#allocation11 + $0x4] sm:$0xf]
    %v433 = vld [vmem:[#allocation11 + $0x8] sm:$0xf]
    %v434 = vld [vmem:[#allocation11 + $0xc] sm:$0xf]
    %v435 = vld [vmem:[#allocation11 + $0x10] sm:$0xf]
    %v436 = vld [vmem:[#allocation11 + $0x14] sm:$0xf]
    %v437 = vld [vmem:[#allocation11 + $0x18] sm:$0xf]
    %v438 = vld [vmem:[#allocation11 + $0x1c] sm:$0xf]
    %v439 = vld [vmem:[#allocation11 + $0x20] sm:$0xf]
    %v440 = vld [vmem:[#allocation11 + $0x24] sm:$0xf]
    %v441 = vld [vmem:[#allocation11 + $0x28] sm:$0xf]
    %v442 = vld [vmem:[#allocation11 + $0x2c] sm:$0xf]
    %v443 = vld [vmem:[#allocation11 + $0x30] sm:$0xf]
    %v444 = vld [vmem:[#allocation11 + $0x34] sm:$0xf]
    %v445 = vld [vmem:[#allocation11 + $0x38] sm:$0xf]
    %v446 = vld [vmem:[#allocation11 + $0x3c] sm:$0xf]
    %v463 = vunpack.c.l.b16 %v431
    %v464 = vunpack.c.l.b16 %v432
    %v465 = vunpack.c.l.b16 %v433
    %v466 = vunpack.c.l.b16 %v434
    %v467 = vunpack.c.l.b16 %v435
    %v468 = vunpack.c.l.b16 %v436
    %v469 = vunpack.c.l.b16 %v437
    %v470 = vunpack.c.l.b16 %v438
    %v471 = vunpack.c.l.b16 %v439
    %v472 = vunpack.c.l.b16 %v440
    %v473 = vunpack.c.l.b16 %v441
    %v474 = vunpack.c.l.b16 %v442
    %v475 = vunpack.c.l.b16 %v443
    %v476 = vunpack.c.l.b16 %v444
    %v477 = vunpack.c.l.b16 %v445
    %v478 = vunpack.c.l.b16 %v446
    %v479 = vpack.c.b16 %v464, %v463
    %v480 = vpack.c.b16 %v466, %v465
    %v481 = vpack.c.b16 %v468, %v467
    %v482 = vpack.c.b16 %v470, %v469
    %v483 = vpack.c.b16 %v472, %v471
    %v484 = vpack.c.b16 %v474, %v473
    %v485 = vpack.c.b16 %v476, %v475
    %v486 = vpack.c.b16 %v478, %v477
    %495 = vmatprep.subr.bf16.mxu0 0
    %496 = vmatpush1.bf16.msra.mxu0 %v479
    %497 = vmatprep.subr.bf16.mxu0 0
    %498 = vmatpush1.bf16.msra.mxu0 %v480
    %499 = vmatprep.subr.bf16.mxu0 0
    %500 = vmatpush1.bf16.msra.mxu0 %v481
    %501 = vmatprep.subr.bf16.mxu0 0
    %502 = vmatpush1.bf16.msra.mxu0 %v482
    %503 = vmatprep.subr.bf16.mxu0 0
    %504 = vmatpush1.bf16.msra.mxu0 %v483
    %505 = vmatprep.subr.bf16.mxu0 0
    %506 = vmatpush1.bf16.msra.mxu0 %v484
    %507 = vmatprep.subr.bf16.mxu0 0
    %508 = vmatpush1.bf16.msra.mxu0 %v485
    %509 = vmatprep.subr.bf16.mxu0 0
    %510 = vmatpush1.bf16.msra.mxu0 %v486
    %511 = vmatprep.subr.bf16.mxu0 0
    %512 = vmatpush1.bf16.msra.mxu0 0
    %513 = vmatprep.subr.bf16.mxu0 0
    %514 = vmatpush1.bf16.msra.mxu0 0
    %515 = vmatprep.subr.bf16.mxu0 0
    %516 = vmatpush1.bf16.msra.mxu0 0
    %517 = vmatprep.subr.bf16.mxu0 0
    %518 = vmatpush1.bf16.msra.mxu0 0
    %519 = vmatprep.subr.bf16.mxu0 0
    %520 = vmatpush1.bf16.msra.mxu0 0
    %521 = vmatprep.subr.bf16.mxu0 0
    %522 = vmatpush1.bf16.msra.mxu0 0
    %523 = vmatprep.subr.bf16.mxu0 0
    %524 = vmatpush1.bf16.msra.mxu0 0
    %525 = vmatprep.subr.bf16.mxu0 0
    %526 = vmatpush1.bf16.msra.mxu0 0
    %527 = vmatprep.mubr.bf16.mxu0 0
    %528 = vmatmul.mubr.bf16.gmra.mrb[0].mxu0 %v423
    %v529 = vpop.f32.mrb[0].mxu0
    %v530 = vadd.f32 0.0, %v529
    %v531 = vpop.f32.mrb[0].mxu0
    %v532 = vpop.f32.mrb[0].mxu0
    %v533 = vadd.f32 0.0, %v532
    %v534 = vpop.f32.mrb[0].mxu0
    %535 = vmatprep.mubr.bf16.mxu0 0
    %536 = vmatmul.mubr.bf16.gmra.mrb[0].mxu0 %v424
    %v537 = vpop.f32.mrb[0].mxu0
    %v538 = vadd.f32 0.0, %v537
    %v539 = vpop.f32.mrb[0].mxu0
    %v540 = vpop.f32.mrb[0].mxu0
    %v541 = vadd.f32 0.0, %v540
    %v542 = vpop.f32.mrb[0].mxu0
    %543 = vmatprep.mubr.bf16.mxu0 0
    %544 = vmatmul.mubr.bf16.gmra.mrb[0].mxu0 %v425
    %v545 = vpop.f32.mrb[0].mxu0
    %v546 = vadd.f32 0.0, %v545
    %v547 = vpop.f32.mrb[0].mxu0
    %v548 = vpop.f32.mrb[0].mxu0
    %v549 = vadd.f32 0.0, %v548
    %v550 = vpop.f32.mrb[0].mxu0
    %551 = vmatprep.mubr.bf16.mxu0 0
    %552 = vmatmul.mubr.bf16.gmra.mrb[0].mxu0 %v426
    %v553 = vpop.f32.mrb[0].mxu0
    %v554 = vadd.f32 0.0, %v553
    %v555 = vpop.f32.mrb[0].mxu0
    %v556 = vpop.f32.mrb[0].mxu0
    %v557 = vadd.f32 0.0, %v556
    %v558 = vpop.f32.mrb[0].mxu0
    %559 = vmatprep.mubr.bf16.mxu0 0
    %560 = vmatmul.mubr.bf16.gmra.mrb[0].mxu0 %v427
    %v561 = vpop.f32.mrb[0].mxu0
    %v562 = vadd.f32 0.0, %v561
    %v563 = vpop.f32.mrb[0].mxu0
    %v564 = vpop.f32.mrb[0].mxu0
    %v565 = vadd.f32 0.0, %v564
    %v566 = vpop.f32.mrb[0].mxu0
    %567 = vmatprep.mubr.bf16.mxu0 0
    %568 = vmatmul.mubr.bf16.gmra.mrb[0].mxu0 %v428
    %v569 = vpop.f32.mrb[0].mxu0
    %v570 = vadd.f32 0.0, %v569
    %v571 = vpop.f32.mrb[0].mxu0
    %v572 = vpop.f32.mrb[0].mxu0
    %v573 = vadd.f32 0.0, %v572
    %v574 = vpop.f32.mrb[0].mxu0
    %575 = vmatprep.mubr.bf16.mxu0 0
    %576 = vmatmul.mubr.bf16.gmra.mrb[0].mxu0 %v429
    %v577 = vpop.f32.mrb[0].mxu0
    %v578 = vadd.f32 0.0, %v577
    %v579 = vpop.f32.mrb[0].mxu0
    %v580 = vpop.f32.mrb[0].mxu0
    %v581 = vadd.f32 0.0, %v580
    %v582 = vpop.f32.mrb[0].mxu0
    %583 = vmatprep.mubr.bf16.mxu0 0
    %584 = vmatmul.mubr.bf16.gmra.mrb[0].mxu0 %v430
    %v585 = vpop.f32.mrb[0].mxu0
    %v586 = vadd.f32 0.0, %v585
    %v587 = vpop.f32.mrb[0].mxu0
    %v588 = vpop.f32.mrb[0].mxu0
    %v589 = vadd.f32 0.0, %v588
    %v590 = vpop.f32.mrb[0].mxu0
    %591 = vdwg.mxu0
    %v608 = vunpack.c.l.b16 %v407
    %v609 = vunpack.c.l.b16 %v408
    %v610 = vunpack.c.l.b16 %v409
    %v611 = vunpack.c.l.b16 %v410
    %v612 = vunpack.c.l.b16 %v411
    %v613 = vunpack.c.l.b16 %v412
    %v614 = vunpack.c.l.b16 %v413
    %v615 = vunpack.c.l.b16 %v414
    %v616 = vunpack.c.l.b16 %v415
    %v617 = vunpack.c.l.b16 %v416
    %v618 = vunpack.c.l.b16 %v417
    %v619 = vunpack.c.l.b16 %v418
    %v620 = vunpack.c.l.b16 %v419
    %v621 = vunpack.c.l.b16 %v420
    %v622 = vunpack.c.l.b16 %v421
    %v623 = vunpack.c.l.b16 %v422
    %v624 = vpack.c.b16 %v609, %v608
    %v625 = vpack.c.b16 %v611, %v610
    %v626 = vpack.c.b16 %v613, %v612
    %v627 = vpack.c.b16 %v615, %v614
    %v628 = vpack.c.b16 %v617, %v616
    %v629 = vpack.c.b16 %v619, %v618
    %v630 = vpack.c.b16 %v621, %v620
    %v631 = vpack.c.b16 %v623, %v622
    %640 = vmatprep.subr.bf16.mxu0 0
    %641 = vmatpush1.bf16.msra.mxu0 %v624
    %642 = vmatprep.subr.bf16.mxu0 0
    %643 = vmatpush1.bf16.msra.mxu0 %v625
    %644 = vmatprep.subr.bf16.mxu0 0
    %645 = vmatpush1.bf16.msra.mxu0 %v626
    %646 = vmatprep.subr.bf16.mxu0 0
    %647 = vmatpush1.bf16.msra.mxu0 %v627
    %648 = vmatprep.subr.bf16.mxu0 0
    %649 = vmatpush1.bf16.msra.mxu0 %v628
    %650 = vmatprep.subr.bf16.mxu0 0
    %651 = vmatpush1.bf16.msra.mxu0 %v629
    %652 = vmatprep.subr.bf16.mxu0 0
    %653 = vmatpush1.bf16.msra.mxu0 %v630
    %654 = vmatprep.subr.bf16.mxu0 0
    %655 = vmatpush1.bf16.msra.mxu0 %v631
    %656 = vmatprep.subr.bf16.mxu0 0
    %657 = vmatpush1.bf16.msra.mxu0 0
    %658 = vmatprep.subr.bf16.mxu0 0
    %659 = vmatpush1.bf16.msra.mxu0 0
    %660 = vmatprep.subr.bf16.mxu0 0
    %661 = vmatpush1.bf16.msra.mxu0 0
    %662 = vmatprep.subr.bf16.mxu0 0
    %663 = vmatpush1.bf16.msra.mxu0 0
    %664 = vmatprep.subr.bf16.mxu0 0
    %665 = vmatpush1.bf16.msra.mxu0 0
    %666 = vmatprep.subr.bf16.mxu0 0
    %667 = vmatpush1.bf16.msra.mxu0 0
    %668 = vmatprep.subr.bf16.mxu0 0
    %669 = vmatpush1.bf16.msra.mxu0 0
    %670 = vmatprep.subr.bf16.mxu0 0
    %671 = vmatpush1.bf16.msra.mxu0 0
    %672 = vmatprep.mubr.bf16.mxu0 0
    %673 = vmatmul.mubr.bf16.gmra.mrb[0].mxu0 %v294
    %v674 = vpop.f32.mrb[0].mxu0
    %v675 = vadd.f32 %v530, %v674
    %v676 = vpop.f32.mrb[0].mxu0
    %v677 = vpop.f32.mrb[0].mxu0
    %v678 = vadd.f32 %v533, %v677
    %v679 = vpop.f32.mrb[0].mxu0
    %680 = vmatprep.mubr.bf16.mxu0 0
    %681 = vmatmul.mubr.bf16.gmra.mrb[0].mxu0 %v295
    %v682 = vpop.f32.mrb[0].mxu0
    %v683 = vadd.f32 %v538, %v682
    %v684 = vpop.f32.mrb[0].mxu0
    %v685 = vpop.f32.mrb[0].mxu0
    %v686 = vadd.f32 %v541, %v685
    %v687 = vpop.f32.mrb[0].mxu0
    %688 = vmatprep.mubr.bf16.mxu0 0
    %689 = vmatmul.mubr.bf16.gmra.mrb[0].mxu0 %v296
    %v690 = vpop.f32.mrb[0].mxu0
    %v691 = vadd.f32 %v546, %v690
    %v692 = vpop.f32.mrb[0].mxu0
    %v693 = vpop.f32.mrb[0].mxu0
    %v694 = vadd.f32 %v549, %v693
    %v695 = vpop.f32.mrb[0].mxu0
    %696 = vmatprep.mubr.bf16.mxu0 0
    %697 = vmatmul.mubr.bf16.gmra.mrb[0].mxu0 %v297
    %v698 = vpop.f32.mrb[0].mxu0
    %v699 = vadd.f32 %v554, %v698
    %v700 = vpop.f32.mrb[0].mxu0
    %v701 = vpop.f32.mrb[0].mxu0
    %v702 = vadd.f32 %v557, %v701
    %v703 = vpop.f32.mrb[0].mxu0
    %704 = vmatprep.mubr.bf16.mxu0 0
    %705 = vmatmul.mubr.bf16.gmra.mrb[0].mxu0 %v298
    %v706 = vpop.f32.mrb[0].mxu0
    %v707 = vadd.f32 %v562, %v706
    %v708 = vpop.f32.mrb[0].mxu0
    %v709 = vpop.f32.mrb[0].mxu0
    %v710 = vadd.f32 %v565, %v709
    %v711 = vpop.f32.mrb[0].mxu0
    %712 = vmatprep.mubr.bf16.mxu0 0
    %713 = vmatmul.mubr.bf16.gmra.mrb[0].mxu0 %v299
    %v714 = vpop.f32.mrb[0].mxu0
    %v715 = vadd.f32 %v570, %v714
    %v716 = vpop.f32.mrb[0].mxu0
    %v717 = vpop.f32.mrb[0].mxu0
    %v718 = vadd.f32 %v573, %v717
    %v719 = vpop.f32.mrb[0].mxu0
    %720 = vmatprep.mubr.bf16.mxu0 0
    %721 = vmatmul.mubr.bf16.gmra.mrb[0].mxu0 %v300
    %v722 = vpop.f32.mrb[0].mxu0
    %v723 = vadd.f32 %v578, %v722
    %v724 = vpop.f32.mrb[0].mxu0
    %v725 = vpop.f32.mrb[0].mxu0
    %v726 = vadd.f32 %v581, %v725
    %v727 = vpop.f32.mrb[0].mxu0
    %728 = vmatprep.mubr.bf16.mxu0 0
    %729 = vmatmul.mubr.bf16.gmra.mrb[0].mxu0 %v301
    %v730 = vpop.f32.mrb[0].mxu0
    %v731 = vadd.f32 %v586, %v730
    %v732 = vpop.f32.mrb[0].mxu0
    %v733 = vpop.f32.mrb[0].mxu0
    %v734 = vadd.f32 %v589, %v733
    %v735 = vpop.f32.mrb[0].mxu0
    %736 = vdwg.mxu0
    %v737 = vld [vmem:[%s6] sm:$0x1]
    %v739 = vlaneseq
    %v740 = vshrl.u32 %v739, 7
    %v741 = vsub.s32 0, %v740
    %v742 = vrot.slane %v737, %v741
    %v744 = vadd.f32 %v675, %v742
    %v745 = vadd.f32 %v678, %v742
    %v746 = vadd.f32 %v683, %v742
    %v747 = vadd.f32 %v686, %v742
    %v748 = vadd.f32 %v691, %v742
    %v749 = vadd.f32 %v694, %v742
    %v750 = vadd.f32 %v699, %v742
    %v751 = vadd.f32 %v702, %v742
    %v752 = vadd.f32 %v707, %v742
    %v753 = vadd.f32 %v710, %v742
    %v754 = vadd.f32 %v715, %v742
    %v755 = vadd.f32 %v718, %v742
    %v756 = vadd.f32 %v723, %v742
    %v757 = vadd.f32 %v726, %v742
    %v758 = vadd.f32 %v731, %v742
    %v759 = vadd.f32 %v734, %v742
    %v760 = vmax.f32 %v744, 0.0
    %v761 = vmax.f32 %v745, 0.0
    %v762 = vmax.f32 %v746, 0.0
    %v763 = vmax.f32 %v747, 0.0
    %v764 = vmax.f32 %v748, 0.0
    %v765 = vmax.f32 %v749, 0.0
    %v766 = vmax.f32 %v750, 0.0
    %v767 = vmax.f32 %v751, 0.0
    %v768 = vmax.f32 %v752, 0.0
    %v769 = vmax.f32 %v753, 0.0
    %v770 = vmax.f32 %v754, 0.0
    %v771 = vmax.f32 %v755, 0.0
    %v772 = vmax.f32 %v756, 0.0
    %v773 = vmax.f32 %v757, 0.0
    %v774 = vmax.f32 %v758, 0.0
    %v775 = vmax.f32 %v759, 0.0
    %v776 = vpack.c.bf16 %v761, %v760
    %v777 = vpack.c.bf16 %v763, %v762
    %v778 = vpack.c.bf16 %v765, %v764
    %v779 = vpack.c.bf16 %v767, %v766
    %v780 = vpack.c.bf16 %v769, %v768
    %v781 = vpack.c.bf16 %v771, %v770
    %v782 = vpack.c.bf16 %v773, %v772
    %v783 = vpack.c.bf16 %v775, %v774
    %v784 = vld [vmem:[#allocation5] sm:$0xf]
    %v785 = vld [vmem:[#allocation5 + $0x4] sm:$0xf]
    %v786 = vld [vmem:[#allocation5 + $0x8] sm:$0xf]
    %v787 = vld [vmem:[#allocation5 + $0xc] sm:$0xf]
    %v788 = vld [vmem:[#allocation5 + $0x10] sm:$0xf]
    %v789 = vld [vmem:[#allocation5 + $0x14] sm:$0xf]
    %v790 = vld [vmem:[#allocation5 + $0x18] sm:$0xf]
    %v791 = vld [vmem:[#allocation5 + $0x1c] sm:$0xf]
    %v792 = vld [vmem:[#allocation5 + $0x20] sm:$0xf]
    %v793 = vld [vmem:[#allocation5 + $0x24] sm:$0xf]
    %v794 = vld [vmem:[#allocation5 + $0x28] sm:$0xf]
    %v795 = vld [vmem:[#allocation5 + $0x2c] sm:$0xf]
    %v796 = vld [vmem:[#allocation5 + $0x30] sm:$0xf]
    %v797 = vld [vmem:[#allocation5 + $0x34] sm:$0xf]
    %v798 = vld [vmem:[#allocation5 + $0x38] sm:$0xf]
    %v799 = vld [vmem:[#allocation5 + $0x3c] sm:$0xf]
    %v816 = vunpack.c.l.b16 %v784
    %v817 = vunpack.c.l.b16 %v785
    %v818 = vunpack.c.l.b16 %v786
    %v819 = vunpack.c.l.b16 %v787
    %v820 = vunpack.c.l.b16 %v788
    %v821 = vunpack.c.l.b16 %v789
    %v822 = vunpack.c.l.b16 %v790
    %v823 = vunpack.c.l.b16 %v791
    %v824 = vunpack.c.l.b16 %v792
    %v825 = vunpack.c.l.b16 %v793
    %v826 = vunpack.c.l.b16 %v794
    %v827 = vunpack.c.l.b16 %v795
    %v828 = vunpack.c.l.b16 %v796
    %v829 = vunpack.c.l.b16 %v797
    %v830 = vunpack.c.l.b16 %v798
    %v831 = vunpack.c.l.b16 %v799
    %v832 = vpack.c.b16 %v817, %v816
    %v833 = vpack.c.b16 %v819, %v818
    %v834 = vpack.c.b16 %v821, %v820
    %v835 = vpack.c.b16 %v823, %v822
    %v836 = vpack.c.b16 %v825, %v824
    %v837 = vpack.c.b16 %v827, %v826
    %v838 = vpack.c.b16 %v829, %v828
    %v839 = vpack.c.b16 %v831, %v830
    %848 = vmatprep.subr.bf16.mxu0 0
    %849 = vmatpush1.bf16.msra.mxu0 %v776
    %850 = vmatprep.subr.bf16.mxu0 0
    %851 = vmatpush1.bf16.msra.mxu0 %v777
    %852 = vmatprep.subr.bf16.mxu0 0
    %853 = vmatpush1.bf16.msra.mxu0 %v778
    %854 = vmatprep.subr.bf16.mxu0 0
    %855 = vmatpush1.bf16.msra.mxu0 %v779
    %856 = vmatprep.subr.bf16.mxu0 0
    %857 = vmatpush1.bf16.msra.mxu0 %v780
    %858 = vmatprep.subr.bf16.mxu0 0
    %859 = vmatpush1.bf16.msra.mxu0 %v781
    %860 = vmatprep.subr.bf16.mxu0 0
    %861 = vmatpush1.bf16.msra.mxu0 %v782
    %862 = vmatprep.subr.bf16.mxu0 0
    %863 = vmatpush1.bf16.msra.mxu0 %v783
    %864 = vmatprep.subr.bf16.mxu0 0
    %865 = vmatpush1.bf16.msra.mxu0 0
    %866 = vmatprep.subr.bf16.mxu0 0
    %867 = vmatpush1.bf16.msra.mxu0 0
    %868 = vmatprep.subr.bf16.mxu0 0
    %869 = vmatpush1.bf16.msra.mxu0 0
    %870 = vmatprep.subr.bf16.mxu0 0
    %871 = vmatpush1.bf16.msra.mxu0 0
    %872 = vmatprep.subr.bf16.mxu0 0
    %873 = vmatpush1.bf16.msra.mxu0 0
    %874 = vmatprep.subr.bf16.mxu0 0
    %875 = vmatpush1.bf16.msra.mxu0 0
    %876 = vmatprep.subr.bf16.mxu0 0
    %877 = vmatpush1.bf16.msra.mxu0 0
    %878 = vmatprep.subr.bf16.mxu0 0
    %879 = vmatpush1.bf16.msra.mxu0 0
    %880 = vmatprep.mubr.bf16.mxu0 0
    %881 = vmatmul.mubr.bf16.gmra.mrb[0].mxu0 %v832
    %v882 = vpop.f32.mrb[0].mxu0
    %v883 = vadd.f32 0.0, %v882
    %v884 = vpop.f32.mrb[0].mxu0
    %v885 = vpop.f32.mrb[0].mxu0
    %v886 = vadd.f32 0.0, %v885
    %v887 = vpop.f32.mrb[0].mxu0
    %888 = vmatprep.mubr.bf16.mxu0 0
    %889 = vmatmul.mubr.bf16.gmra.mrb[0].mxu0 %v833
    %v890 = vpop.f32.mrb[0].mxu0
    %v891 = vadd.f32 0.0, %v890
    %v892 = vpop.f32.mrb[0].mxu0
    %v893 = vpop.f32.mrb[0].mxu0
    %v894 = vadd.f32 0.0, %v893
    %v895 = vpop.f32.mrb[0].mxu0
    %896 = vmatprep.mubr.bf16.mxu0 0
    %897 = vmatmul.mubr.bf16.gmra.mrb[0].mxu0 %v834
    %v898 = vpop.f32.mrb[0].mxu0
    %v899 = vadd.f32 0.0, %v898
    %v900 = vpop.f32.mrb[0].mxu0
    %v901 = vpop.f32.mrb[0].mxu0
    %v902 = vadd.f32 0.0, %v901
    %v903 = vpop.f32.mrb[0].mxu0
    %904 = vmatprep.mubr.bf16.mxu0 0
    %905 = vmatmul.mubr.bf16.gmra.mrb[0].mxu0 %v835
    %v906 = vpop.f32.mrb[0].mxu0
    %v907 = vadd.f32 0.0, %v906
    %v908 = vpop.f32.mrb[0].mxu0
    %v909 = vpop.f32.mrb[0].mxu0
    %v910 = vadd.f32 0.0, %v909
    %v911 = vpop.f32.mrb[0].mxu0
    %912 = vmatprep.mubr.bf16.mxu0 0
    %913 = vmatmul.mubr.bf16.gmra.mrb[0].mxu0 %v836
    %v914 = vpop.f32.mrb[0].mxu0
    %v915 = vadd.f32 0.0, %v914
    %v916 = vpop.f32.mrb[0].mxu0
    %v917 = vpop.f32.mrb[0].mxu0
    %v918 = vadd.f32 0.0, %v917
    %v919 = vpop.f32.mrb[0].mxu0
    %920 = vmatprep.mubr.bf16.mxu0 0
    %921 = vmatmul.mubr.bf16.gmra.mrb[0].mxu0 %v837
    %v922 = vpop.f32.mrb[0].mxu0
    %v923 = vadd.f32 0.0, %v922
    %v924 = vpop.f32.mrb[0].mxu0
    %v925 = vpop.f32.mrb[0].mxu0
    %v926 = vadd.f32 0.0, %v925
    %v927 = vpop.f32.mrb[0].mxu0
    %928 = vmatprep.mubr.bf16.mxu0 0
    %929 = vmatmul.mubr.bf16.gmra.mrb[0].mxu0 %v838
    %v930 = vpop.f32.mrb[0].mxu0
    %v931 = vadd.f32 0.0, %v930
    %v932 = vpop.f32.mrb[0].mxu0
    %v933 = vpop.f32.mrb[0].mxu0
    %v934 = vadd.f32 0.0, %v933
    %v935 = vpop.f32.mrb[0].mxu0
    %936 = vmatprep.mubr.bf16.mxu0 0
    %937 = vmatmul.mubr.bf16.gmra.mrb[0].mxu0 %v839
    %v938 = vpop.f32.mrb[0].mxu0
    %v939 = vadd.f32 0.0, %v938
    %v940 = vpop.f32.mrb[0].mxu0
    %v941 = vpop.f32.mrb[0].mxu0
    %v942 = vadd.f32 0.0, %v941
    %v943 = vpop.f32.mrb[0].mxu0
    %944 = vdwg.mxu0
    %v945 = vld [vmem:[#allocation13] sm:$0xf]
    %v946 = vld [vmem:[#allocation13 + $0x4] sm:$0xf]
    %v947 = vld [vmem:[#allocation13 + $0x8] sm:$0xf]
    %v948 = vld [vmem:[#allocation13 + $0xc] sm:$0xf]
    %v949 = vld [vmem:[#allocation13 + $0x10] sm:$0xf]
    %v950 = vld [vmem:[#allocation13 + $0x14] sm:$0xf]
    %v951 = vld [vmem:[#allocation13 + $0x18] sm:$0xf]
    %v952 = vld [vmem:[#allocation13 + $0x1c] sm:$0xf]
    %v953 = vld [vmem:[#allocation13 + $0x20] sm:$0xf]
    %v954 = vld [vmem:[#allocation13 + $0x24] sm:$0xf]
    %v955 = vld [vmem:[#allocation13 + $0x28] sm:$0xf]
    %v956 = vld [vmem:[#allocation13 + $0x2c] sm:$0xf]
    %v957 = vld [vmem:[#allocation13 + $0x30] sm:$0xf]
    %v958 = vld [vmem:[#allocation13 + $0x34] sm:$0xf]
    %v959 = vld [vmem:[#allocation13 + $0x38] sm:$0xf]
    %v960 = vld [vmem:[#allocation13 + $0x3c] sm:$0xf]
    %v961 = vpack.c.bf16 %v886, %v883
    %v962 = vpack.c.bf16 %v894, %v891
    %v963 = vpack.c.bf16 %v902, %v899
    %v964 = vpack.c.bf16 %v910, %v907
    %v965 = vpack.c.bf16 %v918, %v915
    %v966 = vpack.c.bf16 %v926, %v923
    %v967 = vpack.c.bf16 %v934, %v931
    %v968 = vpack.c.bf16 %v942, %v939
    %v969 = vld [vmem:[#allocation14] sm:$0xf]
    %v970 = vld [vmem:[#allocation14 + $0x4] sm:$0xf]
    %v971 = vld [vmem:[#allocation14 + $0x8] sm:$0xf]
    %v972 = vld [vmem:[#allocation14 + $0xc] sm:$0xf]
    %v973 = vld [vmem:[#allocation14 + $0x10] sm:$0xf]
    %v974 = vld [vmem:[#allocation14 + $0x14] sm:$0xf]
    %v975 = vld [vmem:[#allocation14 + $0x18] sm:$0xf]
    %v976 = vld [vmem:[#allocation14 + $0x1c] sm:$0xf]
    %v977 = vld [vmem:[#allocation14 + $0x20] sm:$0xf]
    %v978 = vld [vmem:[#allocation14 + $0x24] sm:$0xf]
    %v979 = vld [vmem:[#allocation14 + $0x28] sm:$0xf]
    %v980 = vld [vmem:[#allocation14 + $0x2c] sm:$0xf]
    %v981 = vld [vmem:[#allocation14 + $0x30] sm:$0xf]
    %v982 = vld [vmem:[#allocation14 + $0x34] sm:$0xf]
    %v983 = vld [vmem:[#allocation14 + $0x38] sm:$0xf]
    %v984 = vld [vmem:[#allocation14 + $0x3c] sm:$0xf]
    %v1001 = vunpack.c.l.b16 %v969
    %v1002 = vunpack.c.l.b16 %v970
    %v1003 = vunpack.c.l.b16 %v971
    %v1004 = vunpack.c.l.b16 %v972
    %v1005 = vunpack.c.l.b16 %v973
    %v1006 = vunpack.c.l.b16 %v974
    %v1007 = vunpack.c.l.b16 %v975
    %v1008 = vunpack.c.l.b16 %v976
    %v1009 = vunpack.c.l.b16 %v977
    %v1010 = vunpack.c.l.b16 %v978
    %v1011 = vunpack.c.l.b16 %v979
    %v1012 = vunpack.c.l.b16 %v980
    %v1013 = vunpack.c.l.b16 %v981
    %v1014 = vunpack.c.l.b16 %v982
    %v1015 = vunpack.c.l.b16 %v983
    %v1016 = vunpack.c.l.b16 %v984
    %v1017 = vpack.c.b16 %v1002, %v1001
    %v1018 = vpack.c.b16 %v1004, %v1003
    %v1019 = vpack.c.b16 %v1006, %v1005
    %v1020 = vpack.c.b16 %v1008, %v1007
    %v1021 = vpack.c.b16 %v1010, %v1009
    %v1022 = vpack.c.b16 %v1012, %v1011
    %v1023 = vpack.c.b16 %v1014, %v1013
    %v1024 = vpack.c.b16 %v1016, %v1015
    %1033 = vmatprep.subr.bf16.mxu0 0
    %1034 = vmatpush1.bf16.msra.mxu0 %v1017
    %1035 = vmatprep.subr.bf16.mxu0 0
    %1036 = vmatpush1.bf16.msra.mxu0 %v1018
    %1037 = vmatprep.subr.bf16.mxu0 0
    %1038 = vmatpush1.bf16.msra.mxu0 %v1019
    %1039 = vmatprep.subr.bf16.mxu0 0
    %1040 = vmatpush1.bf16.msra.mxu0 %v1020
    %1041 = vmatprep.subr.bf16.mxu0 0
    %1042 = vmatpush1.bf16.msra.mxu0 %v1021
    %1043 = vmatprep.subr.bf16.mxu0 0
    %1044 = vmatpush1.bf16.msra.mxu0 %v1022
    %1045 = vmatprep.subr.bf16.mxu0 0
    %1046 = vmatpush1.bf16.msra.mxu0 %v1023
    %1047 = vmatprep.subr.bf16.mxu0 0
    %1048 = vmatpush1.bf16.msra.mxu0 %v1024
    %1049 = vmatprep.subr.bf16.mxu0 0
    %1050 = vmatpush1.bf16.msra.mxu0 0
    %1051 = vmatprep.subr.bf16.mxu0 0
    %1052 = vmatpush1.bf16.msra.mxu0 0
    %1053 = vmatprep.subr.bf16.mxu0 0
    %1054 = vmatpush1.bf16.msra.mxu0 0
    %1055 = vmatprep.subr.bf16.mxu0 0
    %1056 = vmatpush1.bf16.msra.mxu0 0
    %1057 = vmatprep.subr.bf16.mxu0 0
    %1058 = vmatpush1.bf16.msra.mxu0 0
    %1059 = vmatprep.subr.bf16.mxu0 0
    %1060 = vmatpush1.bf16.msra.mxu0 0
    %1061 = vmatprep.subr.bf16.mxu0 0
    %1062 = vmatpush1.bf16.msra.mxu0 0
    %1063 = vmatprep.subr.bf16.mxu0 0
    %1064 = vmatpush1.bf16.msra.mxu0 0
    %1065 = vmatprep.mubr.bf16.mxu0 0
    %1066 = vmatmul.mubr.bf16.gmra.mrb[0].mxu0 %v961
    %v1067 = vpop.f32.mrb[0].mxu0
    %v1068 = vadd.f32 0.0, %v1067
    %v1069 = vpop.f32.mrb[0].mxu0
    %v1070 = vpop.f32.mrb[0].mxu0
    %v1071 = vadd.f32 0.0, %v1070
    %v1072 = vpop.f32.mrb[0].mxu0
    %1073 = vmatprep.mubr.bf16.mxu0 0
    %1074 = vmatmul.mubr.bf16.gmra.mrb[0].mxu0 %v962
    %v1075 = vpop.f32.mrb[0].mxu0
    %v1076 = vadd.f32 0.0, %v1075
    %v1077 = vpop.f32.mrb[0].mxu0
    %v1078 = vpop.f32.mrb[0].mxu0
    %v1079 = vadd.f32 0.0, %v1078
    %v1080 = vpop.f32.mrb[0].mxu0
    %1081 = vmatprep.mubr.bf16.mxu0 0
    %1082 = vmatmul.mubr.bf16.gmra.mrb[0].mxu0 %v963
    %v1083 = vpop.f32.mrb[0].mxu0
    %v1084 = vadd.f32 0.0, %v1083
    %v1085 = vpop.f32.mrb[0].mxu0
    %v1086 = vpop.f32.mrb[0].mxu0
    %v1087 = vadd.f32 0.0, %v1086
    %v1088 = vpop.f32.mrb[0].mxu0
    %1089 = vmatprep.mubr.bf16.mxu0 0
    %1090 = vmatmul.mubr.bf16.gmra.mrb[0].mxu0 %v964
    %v1091 = vpop.f32.mrb[0].mxu0
    %v1092 = vadd.f32 0.0, %v1091
    %v1093 = vpop.f32.mrb[0].mxu0
    %v1094 = vpop.f32.mrb[0].mxu0
    %v1095 = vadd.f32 0.0, %v1094
    %v1096 = vpop.f32.mrb[0].mxu0
    %1097 = vmatprep.mubr.bf16.mxu0 0
    %1098 = vmatmul.mubr.bf16.gmra.mrb[0].mxu0 %v965
    %v1099 = vpop.f32.mrb[0].mxu0
    %v1100 = vadd.f32 0.0, %v1099
    %v1101 = vpop.f32.mrb[0].mxu0
    %v1102 = vpop.f32.mrb[0].mxu0
    %v1103 = vadd.f32 0.0, %v1102
    %v1104 = vpop.f32.mrb[0].mxu0
    %1105 = vmatprep.mubr.bf16.mxu0 0
    %1106 = vmatmul.mubr.bf16.gmra.mrb[0].mxu0 %v966
    %v1107 = vpop.f32.mrb[0].mxu0
    %v1108 = vadd.f32 0.0, %v1107
    %v1109 = vpop.f32.mrb[0].mxu0
    %v1110 = vpop.f32.mrb[0].mxu0
    %v1111 = vadd.f32 0.0, %v1110
    %v1112 = vpop.f32.mrb[0].mxu0
    %1113 = vmatprep.mubr.bf16.mxu0 0
    %1114 = vmatmul.mubr.bf16.gmra.mrb[0].mxu0 %v967
    %v1115 = vpop.f32.mrb[0].mxu0
    %v1116 = vadd.f32 0.0, %v1115
    %v1117 = vpop.f32.mrb[0].mxu0
    %v1118 = vpop.f32.mrb[0].mxu0
    %v1119 = vadd.f32 0.0, %v1118
    %v1120 = vpop.f32.mrb[0].mxu0
    %1121 = vmatprep.mubr.bf16.mxu0 0
    %1122 = vmatmul.mubr.bf16.gmra.mrb[0].mxu0 %v968
    %v1123 = vpop.f32.mrb[0].mxu0
    %v1124 = vadd.f32 0.0, %v1123
    %v1125 = vpop.f32.mrb[0].mxu0
    %v1126 = vpop.f32.mrb[0].mxu0
    %v1127 = vadd.f32 0.0, %v1126
    %v1128 = vpop.f32.mrb[0].mxu0
    %1129 = vdwg.mxu0
    %v1146 = vunpack.c.l.b16 %v945
    %v1147 = vunpack.c.l.b16 %v946
    %v1148 = vunpack.c.l.b16 %v947
    %v1149 = vunpack.c.l.b16 %v948
    %v1150 = vunpack.c.l.b16 %v949
    %v1151 = vunpack.c.l.b16 %v950
    %v1152 = vunpack.c.l.b16 %v951
    %v1153 = vunpack.c.l.b16 %v952
    %v1154 = vunpack.c.l.b16 %v953
    %v1155 = vunpack.c.l.b16 %v954
    %v1156 = vunpack.c.l.b16 %v955
    %v1157 = vunpack.c.l.b16 %v956
    %v1158 = vunpack.c.l.b16 %v957
    %v1159 = vunpack.c.l.b16 %v958
    %v1160 = vunpack.c.l.b16 %v959
    %v1161 = vunpack.c.l.b16 %v960
    %v1162 = vpack.c.b16 %v1147, %v1146
    %v1163 = vpack.c.b16 %v1149, %v1148
    %v1164 = vpack.c.b16 %v1151, %v1150
    %v1165 = vpack.c.b16 %v1153, %v1152
    %v1166 = vpack.c.b16 %v1155, %v1154
    %v1167 = vpack.c.b16 %v1157, %v1156
    %v1168 = vpack.c.b16 %v1159, %v1158
    %v1169 = vpack.c.b16 %v1161, %v1160
    %1178 = vmatprep.subr.bf16.mxu0 0
    %1179 = vmatpush1.bf16.msra.mxu0 %v1162
    %1180 = vmatprep.subr.bf16.mxu0 0
    %1181 = vmatpush1.bf16.msra.mxu0 %v1163
    %1182 = vmatprep.subr.bf16.mxu0 0
    %1183 = vmatpush1.bf16.msra.mxu0 %v1164
    %1184 = vmatprep.subr.bf16.mxu0 0
    %1185 = vmatpush1.bf16.msra.mxu0 %v1165
    %1186 = vmatprep.subr.bf16.mxu0 0
    %1187 = vmatpush1.bf16.msra.mxu0 %v1166
    %1188 = vmatprep.subr.bf16.mxu0 0
    %1189 = vmatpush1.bf16.msra.mxu0 %v1167
    %1190 = vmatprep.subr.bf16.mxu0 0
    %1191 = vmatpush1.bf16.msra.mxu0 %v1168
    %1192 = vmatprep.subr.bf16.mxu0 0
    %1193 = vmatpush1.bf16.msra.mxu0 %v1169
    %1194 = vmatprep.subr.bf16.mxu0 0
    %1195 = vmatpush1.bf16.msra.mxu0 0
    %1196 = vmatprep.subr.bf16.mxu0 0
    %1197 = vmatpush1.bf16.msra.mxu0 0
    %1198 = vmatprep.subr.bf16.mxu0 0
    %1199 = vmatpush1.bf16.msra.mxu0 0
    %1200 = vmatprep.subr.bf16.mxu0 0
    %1201 = vmatpush1.bf16.msra.mxu0 0
    %1202 = vmatprep.subr.bf16.mxu0 0
    %1203 = vmatpush1.bf16.msra.mxu0 0
    %1204 = vmatprep.subr.bf16.mxu0 0
    %1205 = vmatpush1.bf16.msra.mxu0 0
    %1206 = vmatprep.subr.bf16.mxu0 0
    %1207 = vmatpush1.bf16.msra.mxu0 0
    %1208 = vmatprep.subr.bf16.mxu0 0
    %1209 = vmatpush1.bf16.msra.mxu0 0
    %1210 = vmatprep.mubr.bf16.mxu0 0
    %1211 = vmatmul.mubr.bf16.gmra.mrb[0].mxu0 %v776
    %v1212 = vpop.f32.mrb[0].mxu0
    %v1213 = vadd.f32 %v1068, %v1212
    %v1214 = vpop.f32.mrb[0].mxu0
    %v1215 = vpop.f32.mrb[0].mxu0
    %v1216 = vadd.f32 %v1071, %v1215
    %v1217 = vpop.f32.mrb[0].mxu0
    %1218 = vmatprep.mubr.bf16.mxu0 0
    %1219 = vmatmul.mubr.bf16.gmra.mrb[0].mxu0 %v777
    %v1220 = vpop.f32.mrb[0].mxu0
    %v1221 = vadd.f32 %v1076, %v1220
    %v1222 = vpop.f32.mrb[0].mxu0
    %v1223 = vpop.f32.mrb[0].mxu0
    %v1224 = vadd.f32 %v1079, %v1223
    %v1225 = vpop.f32.mrb[0].mxu0
    %1226 = vmatprep.mubr.bf16.mxu0 0
    %1227 = vmatmul.mubr.bf16.gmra.mrb[0].mxu0 %v778
    %v1228 = vpop.f32.mrb[0].mxu0
    %v1229 = vadd.f32 %v1084, %v1228
    %v1230 = vpop.f32.mrb[0].mxu0
    %v1231 = vpop.f32.mrb[0].mxu0
    %v1232 = vadd.f32 %v1087, %v1231
    %v1233 = vpop.f32.mrb[0].mxu0
    %1234 = vmatprep.mubr.bf16.mxu0 0
    %1235 = vmatmul.mubr.bf16.gmra.mrb[0].mxu0 %v779
    %v1236 = vpop.f32.mrb[0].mxu0
    %v1237 = vadd.f32 %v1092, %v1236
    %v1238 = vpop.f32.mrb[0].mxu0
    %v1239 = vpop.f32.mrb[0].mxu0
    %v1240 = vadd.f32 %v1095, %v1239
    %v1241 = vpop.f32.mrb[0].mxu0
    %1242 = vmatprep.mubr.bf16.mxu0 0
    %1243 = vmatmul.mubr.bf16.gmra.mrb[0].mxu0 %v780
    %v1244 = vpop.f32.mrb[0].mxu0
    %v1245 = vadd.f32 %v1100, %v1244
    %v1246 = vpop.f32.mrb[0].mxu0
    %v1247 = vpop.f32.mrb[0].mxu0
    %v1248 = vadd.f32 %v1103, %v1247
    %v1249 = vpop.f32.mrb[0].mxu0
    %1250 = vmatprep.mubr.bf16.mxu0 0
    %1251 = vmatmul.mubr.bf16.gmra.mrb[0].mxu0 %v781
    %v1252 = vpop.f32.mrb[0].mxu0
    %v1253 = vadd.f32 %v1108, %v1252
    %v1254 = vpop.f32.mrb[0].mxu0
    %v1255 = vpop.f32.mrb[0].mxu0
    %v1256 = vadd.f32 %v1111, %v1255
    %v1257 = vpop.f32.mrb[0].mxu0
    %1258 = vmatprep.mubr.bf16.mxu0 0
    %1259 = vmatmul.mubr.bf16.gmra.mrb[0].mxu0 %v782
    %v1260 = vpop.f32.mrb[0].mxu0
    %v1261 = vadd.f32 %v1116, %v1260
    %v1262 = vpop.f32.mrb[0].mxu0
    %v1263 = vpop.f32.mrb[0].mxu0
    %v1264 = vadd.f32 %v1119, %v1263
    %v1265 = vpop.f32.mrb[0].mxu0
    %1266 = vmatprep.mubr.bf16.mxu0 0
    %1267 = vmatmul.mubr.bf16.gmra.mrb[0].mxu0 %v783
    %v1268 = vpop.f32.mrb[0].mxu0
    %v1269 = vadd.f32 %v1124, %v1268
    %v1270 = vpop.f32.mrb[0].mxu0
    %v1271 = vpop.f32.mrb[0].mxu0
    %v1272 = vadd.f32 %v1127, %v1271
    %v1273 = vpop.f32.mrb[0].mxu0
    %1274 = vdwg.mxu0
    %v1275 = vld [vmem:[%s9] sm:$0x1]
    %v1277 = vlaneseq
    %v1278 = vshrl.u32 %v1277, 7
    %v1279 = vsub.s32 0, %v1278
    %v1280 = vrot.slane %v1275, %v1279
    %v1282 = vadd.f32 %v1213, %v1280
    %v1283 = vadd.f32 %v1216, %v1280
    %v1284 = vadd.f32 %v1221, %v1280
    %v1285 = vadd.f32 %v1224, %v1280
    %v1286 = vadd.f32 %v1229, %v1280
    %v1287 = vadd.f32 %v1232, %v1280
    %v1288 = vadd.f32 %v1237, %v1280
    %v1289 = vadd.f32 %v1240, %v1280
    %v1290 = vadd.f32 %v1245, %v1280
    %v1291 = vadd.f32 %v1248, %v1280
    %v1292 = vadd.f32 %v1253, %v1280
    %v1293 = vadd.f32 %v1256, %v1280
    %v1294 = vadd.f32 %v1261, %v1280
    %v1295 = vadd.f32 %v1264, %v1280
    %v1296 = vadd.f32 %v1269, %v1280
    %v1297 = vadd.f32 %v1272, %v1280
    %v1298 = vmax.f32 %v1282, 0.0
    %v1299 = vmax.f32 %v1283, 0.0
    %v1300 = vmax.f32 %v1284, 0.0
    %v1301 = vmax.f32 %v1285, 0.0
    %v1302 = vmax.f32 %v1286, 0.0
    %v1303 = vmax.f32 %v1287, 0.0
    %v1304 = vmax.f32 %v1288, 0.0
    %v1305 = vmax.f32 %v1289, 0.0
    %v1306 = vmax.f32 %v1290, 0.0
    %v1307 = vmax.f32 %v1291, 0.0
    %v1308 = vmax.f32 %v1292, 0.0
    %v1309 = vmax.f32 %v1293, 0.0
    %v1310 = vmax.f32 %v1294, 0.0
    %v1311 = vmax.f32 %v1295, 0.0
    %v1312 = vmax.f32 %v1296, 0.0
    %v1313 = vmax.f32 %v1297, 0.0
    %v1314 = vpack.c.bf16 %v1299, %v1298
    %v1315 = vpack.c.bf16 %v1301, %v1300
    %v1316 = vpack.c.bf16 %v1303, %v1302
    %v1317 = vpack.c.bf16 %v1305, %v1304
    %v1318 = vpack.c.bf16 %v1307, %v1306
    %v1319 = vpack.c.bf16 %v1309, %v1308
    %v1320 = vpack.c.bf16 %v1311, %v1310
    %v1321 = vpack.c.bf16 %v1313, %v1312
    %v1322 = vld [vmem:[#allocation7] sm:$0xf]
    %v1323 = vld [vmem:[#allocation7 + $0x4] sm:$0xf]
    %v1324 = vld [vmem:[#allocation7 + $0x8] sm:$0xf]
    %v1325 = vld [vmem:[#allocation7 + $0xc] sm:$0xf]
    %v1326 = vld [vmem:[#allocation7 + $0x10] sm:$0xf]
    %v1327 = vld [vmem:[#allocation7 + $0x14] sm:$0xf]
    %v1328 = vld [vmem:[#allocation7 + $0x18] sm:$0xf]
    %v1329 = vld [vmem:[#allocation7 + $0x1c] sm:$0xf]
    %v1330 = vld [vmem:[#allocation7 + $0x20] sm:$0xf]
    %v1331 = vld [vmem:[#allocation7 + $0x24] sm:$0xf]
    %v1332 = vld [vmem:[#allocation7 + $0x28] sm:$0xf]
    %v1333 = vld [vmem:[#allocation7 + $0x2c] sm:$0xf]
    %v1334 = vld [vmem:[#allocation7 + $0x30] sm:$0xf]
    %v1335 = vld [vmem:[#allocation7 + $0x34] sm:$0xf]
    %v1336 = vld [vmem:[#allocation7 + $0x38] sm:$0xf]
    %v1337 = vld [vmem:[#allocation7 + $0x3c] sm:$0xf]
    %v1354 = vunpack.c.l.b16 %v1322
    %v1355 = vunpack.c.l.b16 %v1323
    %v1356 = vunpack.c.l.b16 %v1324
    %v1357 = vunpack.c.l.b16 %v1325
    %v1358 = vunpack.c.l.b16 %v1326
    %v1359 = vunpack.c.l.b16 %v1327
    %v1360 = vunpack.c.l.b16 %v1328
    %v1361 = vunpack.c.l.b16 %v1329
    %v1362 = vunpack.c.l.b16 %v1330
    %v1363 = vunpack.c.l.b16 %v1331
    %v1364 = vunpack.c.l.b16 %v1332
    %v1365 = vunpack.c.l.b16 %v1333
    %v1366 = vunpack.c.l.b16 %v1334
    %v1367 = vunpack.c.l.b16 %v1335
    %v1368 = vunpack.c.l.b16 %v1336
    %v1369 = vunpack.c.l.b16 %v1337
    %v1370 = vpack.c.b16 %v1355, %v1354
    %v1371 = vpack.c.b16 %v1357, %v1356
    %v1372 = vpack.c.b16 %v1359, %v1358
    %v1373 = vpack.c.b16 %v1361, %v1360
    %v1374 = vpack.c.b16 %v1363, %v1362
    %v1375 = vpack.c.b16 %v1365, %v1364
    %v1376 = vpack.c.b16 %v1367, %v1366
    %v1377 = vpack.c.b16 %v1369, %v1368
    %1386 = vmatprep.subr.bf16.mxu0 0
    %1387 = vmatpush1.bf16.msra.mxu0 %v1314
    %1388 = vmatprep.subr.bf16.mxu0 0
    %1389 = vmatpush1.bf16.msra.mxu0 %v1315
    %1390 = vmatprep.subr.bf16.mxu0 0
    %1391 = vmatpush1.bf16.msra.mxu0 %v1316
    %1392 = vmatprep.subr.bf16.mxu0 0
    %1393 = vmatpush1.bf16.msra.mxu0 %v1317
    %1394 = vmatprep.subr.bf16.mxu0 0
    %1395 = vmatpush1.bf16.msra.mxu0 %v1318
    %1396 = vmatprep.subr.bf16.mxu0 0
    %1397 = vmatpush1.bf16.msra.mxu0 %v1319
    %1398 = vmatprep.subr.bf16.mxu0 0
    %1399 = vmatpush1.bf16.msra.mxu0 %v1320
    %1400 = vmatprep.subr.bf16.mxu0 0
    %1401 = vmatpush1.bf16.msra.mxu0 %v1321
    %1402 = vmatprep.subr.bf16.mxu0 0
    %1403 = vmatpush1.bf16.msra.mxu0 0
    %1404 = vmatprep.subr.bf16.mxu0 0
    %1405 = vmatpush1.bf16.msra.mxu0 0
    %1406 = vmatprep.subr.bf16.mxu0 0
    %1407 = vmatpush1.bf16.msra.mxu0 0
    %1408 = vmatprep.subr.bf16.mxu0 0
    %1409 = vmatpush1.bf16.msra.mxu0 0
    %1410 = vmatprep.subr.bf16.mxu0 0
    %1411 = vmatpush1.bf16.msra.mxu0 0
    %1412 = vmatprep.subr.bf16.mxu0 0
    %1413 = vmatpush1.bf16.msra.mxu0 0
    %1414 = vmatprep.subr.bf16.mxu0 0
    %1415 = vmatpush1.bf16.msra.mxu0 0
    %1416 = vmatprep.subr.bf16.mxu0 0
    %1417 = vmatpush1.bf16.msra.mxu0 0
    %1418 = vmatprep.mubr.bf16.mxu0 0
    %1419 = vmatmul.mubr.bf16.gmra.mrb[0].mxu0 %v1370
    %v1420 = vpop.f32.mrb[0].mxu0
    %v1421 = vadd.f32 0.0, %v1420
    %v1422 = vpop.f32.mrb[0].mxu0
    %v1423 = vpop.f32.mrb[0].mxu0
    %v1424 = vadd.f32 0.0, %v1423
    %v1425 = vpop.f32.mrb[0].mxu0
    %1426 = vmatprep.mubr.bf16.mxu0 0
    %1427 = vmatmul.mubr.bf16.gmra.mrb[0].mxu0 %v1371
    %v1428 = vpop.f32.mrb[0].mxu0
    %v1429 = vadd.f32 0.0, %v1428
    %v1430 = vpop.f32.mrb[0].mxu0
    %v1431 = vpop.f32.mrb[0].mxu0
    %v1432 = vadd.f32 0.0, %v1431
    %v1433 = vpop.f32.mrb[0].mxu0
    %1434 = vmatprep.mubr.bf16.mxu0 0
    %1435 = vmatmul.mubr.bf16.gmra.mrb[0].mxu0 %v1372
    %v1436 = vpop.f32.mrb[0].mxu0
    %v1437 = vadd.f32 0.0, %v1436
    %v1438 = vpop.f32.mrb[0].mxu0
    %v1439 = vpop.f32.mrb[0].mxu0
    %v1440 = vadd.f32 0.0, %v1439
    %v1441 = vpop.f32.mrb[0].mxu0
    %1442 = vmatprep.mubr.bf16.mxu0 0
    %1443 = vmatmul.mubr.bf16.gmra.mrb[0].mxu0 %v1373
    %v1444 = vpop.f32.mrb[0].mxu0
    %v1445 = vadd.f32 0.0, %v1444
    %v1446 = vpop.f32.mrb[0].mxu0
    %v1447 = vpop.f32.mrb[0].mxu0
    %v1448 = vadd.f32 0.0, %v1447
    %v1449 = vpop.f32.mrb[0].mxu0
    %1450 = vmatprep.mubr.bf16.mxu0 0
    %1451 = vmatmul.mubr.bf16.gmra.mrb[0].mxu0 %v1374
    %v1452 = vpop.f32.mrb[0].mxu0
    %v1453 = vadd.f32 0.0, %v1452
    %v1454 = vpop.f32.mrb[0].mxu0
    %v1455 = vpop.f32.mrb[0].mxu0
    %v1456 = vadd.f32 0.0, %v1455
    %v1457 = vpop.f32.mrb[0].mxu0
    %1458 = vmatprep.mubr.bf16.mxu0 0
    %1459 = vmatmul.mubr.bf16.gmra.mrb[0].mxu0 %v1375
    %v1460 = vpop.f32.mrb[0].mxu0
    %v1461 = vadd.f32 0.0, %v1460
    %v1462 = vpop.f32.mrb[0].mxu0
    %v1463 = vpop.f32.mrb[0].mxu0
    %v1464 = vadd.f32 0.0, %v1463
    %v1465 = vpop.f32.mrb[0].mxu0
    %1466 = vmatprep.mubr.bf16.mxu0 0
    %1467 = vmatmul.mubr.bf16.gmra.mrb[0].mxu0 %v1376
    %v1468 = vpop.f32.mrb[0].mxu0
    %v1469 = vadd.f32 0.0, %v1468
    %v1470 = vpop.f32.mrb[0].mxu0
    %v1471 = vpop.f32.mrb[0].mxu0
    %v1472 = vadd.f32 0.0, %v1471
    %v1473 = vpop.f32.mrb[0].mxu0
    %1474 = vmatprep.mubr.bf16.mxu0 0
    %1475 = vmatmul.mubr.bf16.gmra.mrb[0].mxu0 %v1377
    %v1476 = vpop.f32.mrb[0].mxu0
    %v1477 = vadd.f32 0.0, %v1476
    %v1478 = vpop.f32.mrb[0].mxu0
    %v1479 = vpop.f32.mrb[0].mxu0
    %v1480 = vadd.f32 0.0, %v1479
    %v1481 = vpop.f32.mrb[0].mxu0
    %1482 = vdwg.mxu0
    %v1483 = vld [vmem:[#allocation16] sm:$0xf]
    %v1484 = vld [vmem:[#allocation16 + $0x4] sm:$0xf]
    %v1485 = vld [vmem:[#allocation16 + $0x8] sm:$0xf]
    %v1486 = vld [vmem:[#allocation16 + $0xc] sm:$0xf]
    %v1487 = vld [vmem:[#allocation16 + $0x10] sm:$0xf]
    %v1488 = vld [vmem:[#allocation16 + $0x14] sm:$0xf]
    %v1489 = vld [vmem:[#allocation16 + $0x18] sm:$0xf]
    %v1490 = vld [vmem:[#allocation16 + $0x1c] sm:$0xf]
    %v1491 = vld [vmem:[#allocation16 + $0x20] sm:$0xf]
    %v1492 = vld [vmem:[#allocation16 + $0x24] sm:$0xf]
    %v1493 = vld [vmem:[#allocation16 + $0x28] sm:$0xf]
    %v1494 = vld [vmem:[#allocation16 + $0x2c] sm:$0xf]
    %v1495 = vld [vmem:[#allocation16 + $0x30] sm:$0xf]
    %v1496 = vld [vmem:[#allocation16 + $0x34] sm:$0xf]
    %v1497 = vld [vmem:[#allocation16 + $0x38] sm:$0xf]
    %v1498 = vld [vmem:[#allocation16 + $0x3c] sm:$0xf]
    %v1499 = vpack.c.bf16 %v1424, %v1421
    %v1500 = vpack.c.bf16 %v1432, %v1429
    %v1501 = vpack.c.bf16 %v1440, %v1437
    %v1502 = vpack.c.bf16 %v1448, %v1445
    %v1503 = vpack.c.bf16 %v1456, %v1453
    %v1504 = vpack.c.bf16 %v1464, %v1461
    %v1505 = vpack.c.bf16 %v1472, %v1469
    %v1506 = vpack.c.bf16 %v1480, %v1477
    %v1507 = vld [vmem:[#allocation17] sm:$0xf]
    %v1508 = vld [vmem:[#allocation17 + $0x4] sm:$0xf]
    %v1509 = vld [vmem:[#allocation17 + $0x8] sm:$0xf]
    %v1510 = vld [vmem:[#allocation17 + $0xc] sm:$0xf]
    %v1511 = vld [vmem:[#allocation17 + $0x10] sm:$0xf]
    %v1512 = vld [vmem:[#allocation17 + $0x14] sm:$0xf]
    %v1513 = vld [vmem:[#allocation17 + $0x18] sm:$0xf]
    %v1514 = vld [vmem:[#allocation17 + $0x1c] sm:$0xf]
    %v1515 = vld [vmem:[#allocation17 + $0x20] sm:$0xf]
    %v1516 = vld [vmem:[#allocation17 + $0x24] sm:$0xf]
    %v1517 = vld [vmem:[#allocation17 + $0x28] sm:$0xf]
    %v1518 = vld [vmem:[#allocation17 + $0x2c] sm:$0xf]
    %v1519 = vld [vmem:[#allocation17 + $0x30] sm:$0xf]
    %v1520 = vld [vmem:[#allocation17 + $0x34] sm:$0xf]
    %v1521 = vld [vmem:[#allocation17 + $0x38] sm:$0xf]
    %v1522 = vld [vmem:[#allocation17 + $0x3c] sm:$0xf]
    %v1539 = vunpack.c.l.b16 %v1507
    %v1540 = vunpack.c.l.b16 %v1508
    %v1541 = vunpack.c.l.b16 %v1509
    %v1542 = vunpack.c.l.b16 %v1510
    %v1543 = vunpack.c.l.b16 %v1511
    %v1544 = vunpack.c.l.b16 %v1512
    %v1545 = vunpack.c.l.b16 %v1513
    %v1546 = vunpack.c.l.b16 %v1514
    %v1547 = vunpack.c.l.b16 %v1515
    %v1548 = vunpack.c.l.b16 %v1516
    %v1549 = vunpack.c.l.b16 %v1517
    %v1550 = vunpack.c.l.b16 %v1518
    %v1551 = vunpack.c.l.b16 %v1519
    %v1552 = vunpack.c.l.b16 %v1520
    %v1553 = vunpack.c.l.b16 %v1521
    %v1554 = vunpack.c.l.b16 %v1522
    %v1555 = vpack.c.b16 %v1540, %v1539
    %v1556 = vpack.c.b16 %v1542, %v1541
    %v1557 = vpack.c.b16 %v1544, %v1543
    %v1558 = vpack.c.b16 %v1546, %v1545
    %v1559 = vpack.c.b16 %v1548, %v1547
    %v1560 = vpack.c.b16 %v1550, %v1549
    %v1561 = vpack.c.b16 %v1552, %v1551
    %v1562 = vpack.c.b16 %v1554, %v1553
    %1571 = vmatprep.subr.bf16.mxu0 0
    %1572 = vmatpush1.bf16.msra.mxu0 %v1555
    %1573 = vmatprep.subr.bf16.mxu0 0
    %1574 = vmatpush1.bf16.msra.mxu0 %v1556
    %1575 = vmatprep.subr.bf16.mxu0 0
    %1576 = vmatpush1.bf16.msra.mxu0 %v1557
    %1577 = vmatprep.subr.bf16.mxu0 0
    %1578 = vmatpush1.bf16.msra.mxu0 %v1558
    %1579 = vmatprep.subr.bf16.mxu0 0
    %1580 = vmatpush1.bf16.msra.mxu0 %v1559
    %1581 = vmatprep.subr.bf16.mxu0 0
    %1582 = vmatpush1.bf16.msra.mxu0 %v1560
    %1583 = vmatprep.subr.bf16.mxu0 0
    %1584 = vmatpush1.bf16.msra.mxu0 %v1561
    %1585 = vmatprep.subr.bf16.mxu0 0
    %1586 = vmatpush1.bf16.msra.mxu0 %v1562
    %1587 = vmatprep.subr.bf16.mxu0 0
    %1588 = vmatpush1.bf16.msra.mxu0 0
    %1589 = vmatprep.subr.bf16.mxu0 0
    %1590 = vmatpush1.bf16.msra.mxu0 0
    %1591 = vmatprep.subr.bf16.mxu0 0
    %1592 = vmatpush1.bf16.msra.mxu0 0
    %1593 = vmatprep.subr.bf16.mxu0 0
    %1594 = vmatpush1.bf16.msra.mxu0 0
    %1595 = vmatprep.subr.bf16.mxu0 0
    %1596 = vmatpush1.bf16.msra.mxu0 0
    %1597 = vmatprep.subr.bf16.mxu0 0
    %1598 = vmatpush1.bf16.msra.mxu0 0
    %1599 = vmatprep.subr.bf16.mxu0 0
    %1600 = vmatpush1.bf16.msra.mxu0 0
    %1601 = vmatprep.subr.bf16.mxu0 0
    %1602 = vmatpush1.bf16.msra.mxu0 0
    %1603 = vmatprep.mubr.bf16.mxu0 0
    %1604 = vmatmul.mubr.bf16.gmra.mrb[0].mxu0 %v1499
    %v1605 = vpop.f32.mrb[0].mxu0
    %v1606 = vadd.f32 0.0, %v1605
    %v1607 = vpop.f32.mrb[0].mxu0
    %v1608 = vpop.f32.mrb[0].mxu0
    %v1609 = vadd.f32 0.0, %v1608
    %v1610 = vpop.f32.mrb[0].mxu0
    %1611 = vmatprep.mubr.bf16.mxu0 0
    %1612 = vmatmul.mubr.bf16.gmra.mrb[0].mxu0 %v1500
    %v1613 = vpop.f32.mrb[0].mxu0
    %v1614 = vadd.f32 0.0, %v1613
    %v1615 = vpop.f32.mrb[0].mxu0
    %v1616 = vpop.f32.mrb[0].mxu0
    %v1617 = vadd.f32 0.0, %v1616
    %v1618 = vpop.f32.mrb[0].mxu0
    %1619 = vmatprep.mubr.bf16.mxu0 0
    %1620 = vmatmul.mubr.bf16.gmra.mrb[0].mxu0 %v1501
    %v1621 = vpop.f32.mrb[0].mxu0
    %v1622 = vadd.f32 0.0, %v1621
    %v1623 = vpop.f32.mrb[0].mxu0
    %v1624 = vpop.f32.mrb[0].mxu0
    %v1625 = vadd.f32 0.0, %v1624
    %v1626 = vpop.f32.mrb[0].mxu0
    %1627 = vmatprep.mubr.bf16.mxu0 0
    %1628 = vmatmul.mubr.bf16.gmra.mrb[0].mxu0 %v1502
    %v1629 = vpop.f32.mrb[0].mxu0
    %v1630 = vadd.f32 0.0, %v1629
    %v1631 = vpop.f32.mrb[0].mxu0
    %v1632 = vpop.f32.mrb[0].mxu0
    %v1633 = vadd.f32 0.0, %v1632
    %v1634 = vpop.f32.mrb[0].mxu0
    %1635 = vmatprep.mubr.bf16.mxu0 0
    %1636 = vmatmul.mubr.bf16.gmra.mrb[0].mxu0 %v1503
    %v1637 = vpop.f32.mrb[0].mxu0
    %v1638 = vadd.f32 0.0, %v1637
    %v1639 = vpop.f32.mrb[0].mxu0
    %v1640 = vpop.f32.mrb[0].mxu0
    %v1641 = vadd.f32 0.0, %v1640
    %v1642 = vpop.f32.mrb[0].mxu0
    %1643 = vmatprep.mubr.bf16.mxu0 0
    %1644 = vmatmul.mubr.bf16.gmra.mrb[0].mxu0 %v1504
    %v1645 = vpop.f32.mrb[0].mxu0
    %v1646 = vadd.f32 0.0, %v1645
    %v1647 = vpop.f32.mrb[0].mxu0
    %v1648 = vpop.f32.mrb[0].mxu0
    %v1649 = vadd.f32 0.0, %v1648
    %v1650 = vpop.f32.mrb[0].mxu0
    %1651 = vmatprep.mubr.bf16.mxu0 0
    %1652 = vmatmul.mubr.bf16.gmra.mrb[0].mxu0 %v1505
    %v1653 = vpop.f32.mrb[0].mxu0
    %v1654 = vadd.f32 0.0, %v1653
    %v1655 = vpop.f32.mrb[0].mxu0
    %v1656 = vpop.f32.mrb[0].mxu0
    %v1657 = vadd.f32 0.0, %v1656
    %v1658 = vpop.f32.mrb[0].mxu0
    %1659 = vmatprep.mubr.bf16.mxu0 0
    %1660 = vmatmul.mubr.bf16.gmra.mrb[0].mxu0 %v1506
    %v1661 = vpop.f32.mrb[0].mxu0
    %v1662 = vadd.f32 0.0, %v1661
    %v1663 = vpop.f32.mrb[0].mxu0
    %v1664 = vpop.f32.mrb[0].mxu0
    %v1665 = vadd.f32 0.0, %v1664
    %v1666 = vpop.f32.mrb[0].mxu0
    %1667 = vdwg.mxu0
    %v1684 = vunpack.c.l.b16 %v1483
    %v1685 = vunpack.c.l.b16 %v1484
    %v1686 = vunpack.c.l.b16 %v1485
    %v1687 = vunpack.c.l.b16 %v1486
    %v1688 = vunpack.c.l.b16 %v1487
    %v1689 = vunpack.c.l.b16 %v1488
    %v1690 = vunpack.c.l.b16 %v1489
    %v1691 = vunpack.c.l.b16 %v1490
    %v1692 = vunpack.c.l.b16 %v1491
    %v1693 = vunpack.c.l.b16 %v1492
    %v1694 = vunpack.c.l.b16 %v1493
    %v1695 = vunpack.c.l.b16 %v1494
    %v1696 = vunpack.c.l.b16 %v1495
    %v1697 = vunpack.c.l.b16 %v1496
    %v1698 = vunpack.c.l.b16 %v1497
    %v1699 = vunpack.c.l.b16 %v1498
    %v1700 = vpack.c.b16 %v1685, %v1684
    %v1701 = vpack.c.b16 %v1687, %v1686
    %v1702 = vpack.c.b16 %v1689, %v1688
    %v1703 = vpack.c.b16 %v1691, %v1690
    %v1704 = vpack.c.b16 %v1693, %v1692
    %v1705 = vpack.c.b16 %v1695, %v1694
    %v1706 = vpack.c.b16 %v1697, %v1696
    %v1707 = vpack.c.b16 %v1699, %v1698
    %1716 = vmatprep.subr.bf16.mxu0 0
    %1717 = vmatpush1.bf16.msra.mxu0 %v1700
    %1718 = vmatprep.subr.bf16.mxu0 0
    %1719 = vmatpush1.bf16.msra.mxu0 %v1701
    %1720 = vmatprep.subr.bf16.mxu0 0
    %1721 = vmatpush1.bf16.msra.mxu0 %v1702
    %1722 = vmatprep.subr.bf16.mxu0 0
    %1723 = vmatpush1.bf16.msra.mxu0 %v1703
    %1724 = vmatprep.subr.bf16.mxu0 0
    %1725 = vmatpush1.bf16.msra.mxu0 %v1704
    %1726 = vmatprep.subr.bf16.mxu0 0
    %1727 = vmatpush1.bf16.msra.mxu0 %v1705
    %1728 = vmatprep.subr.bf16.mxu0 0
    %1729 = vmatpush1.bf16.msra.mxu0 %v1706
    %1730 = vmatprep.subr.bf16.mxu0 0
    %1731 = vmatpush1.bf16.msra.mxu0 %v1707
    %1732 = vmatprep.subr.bf16.mxu0 0
    %1733 = vmatpush1.bf16.msra.mxu0 0
    %1734 = vmatprep.subr.bf16.mxu0 0
    %1735 = vmatpush1.bf16.msra.mxu0 0
    %1736 = vmatprep.subr.bf16.mxu0 0
    %1737 = vmatpush1.bf16.msra.mxu0 0
    %1738 = vmatprep.subr.bf16.mxu0 0
    %1739 = vmatpush1.bf16.msra.mxu0 0
    %1740 = vmatprep.subr.bf16.mxu0 0
    %1741 = vmatpush1.bf16.msra.mxu0 0
    %1742 = vmatprep.subr.bf16.mxu0 0
    %1743 = vmatpush1.bf16.msra.mxu0 0
    %1744 = vmatprep.subr.bf16.mxu0 0
    %1745 = vmatpush1.bf16.msra.mxu0 0
    %1746 = vmatprep.subr.bf16.mxu0 0
    %1747 = vmatpush1.bf16.msra.mxu0 0
    %1748 = vmatprep.mubr.bf16.mxu0 0
    %1749 = vmatmul.mubr.bf16.gmra.mrb[0].mxu0 %v1314
    %v1750 = vpop.f32.mrb[0].mxu0
    %v1751 = vadd.f32 %v1606, %v1750
    %v1752 = vpop.f32.mrb[0].mxu0
    %v1753 = vpop.f32.mrb[0].mxu0
    %v1754 = vadd.f32 %v1609, %v1753
    %v1755 = vpop.f32.mrb[0].mxu0
    %1756 = vmatprep.mubr.bf16.mxu0 0
    %1757 = vmatmul.mubr.bf16.gmra.mrb[0].mxu0 %v1315
    %v1758 = vpop.f32.mrb[0].mxu0
    %v1759 = vadd.f32 %v1614, %v1758
    %v1760 = vpop.f32.mrb[0].mxu0
    %v1761 = vpop.f32.mrb[0].mxu0
    %v1762 = vadd.f32 %v1617, %v1761
    %v1763 = vpop.f32.mrb[0].mxu0
    %1764 = vmatprep.mubr.bf16.mxu0 0
    %1765 = vmatmul.mubr.bf16.gmra.mrb[0].mxu0 %v1316
    %v1766 = vpop.f32.mrb[0].mxu0
    %v1767 = vadd.f32 %v1622, %v1766
    %v1768 = vpop.f32.mrb[0].mxu0
    %v1769 = vpop.f32.mrb[0].mxu0
    %v1770 = vadd.f32 %v1625, %v1769
    %v1771 = vpop.f32.mrb[0].mxu0
    %1772 = vmatprep.mubr.bf16.mxu0 0
    %1773 = vmatmul.mubr.bf16.gmra.mrb[0].mxu0 %v1317
    %v1774 = vpop.f32.mrb[0].mxu0
    %v1775 = vadd.f32 %v1630, %v1774
    %v1776 = vpop.f32.mrb[0].mxu0
    %v1777 = vpop.f32.mrb[0].mxu0
    %v1778 = vadd.f32 %v1633, %v1777
    %v1779 = vpop.f32.mrb[0].mxu0
    %1780 = vmatprep.mubr.bf16.mxu0 0
    %1781 = vmatmul.mubr.bf16.gmra.mrb[0].mxu0 %v1318
    %v1782 = vpop.f32.mrb[0].mxu0
    %v1783 = vadd.f32 %v1638, %v1782
    %v1784 = vpop.f32.mrb[0].mxu0
    %v1785 = vpop.f32.mrb[0].mxu0
    %v1786 = vadd.f32 %v1641, %v1785
    %v1787 = vpop.f32.mrb[0].mxu0
    %1788 = vmatprep.mubr.bf16.mxu0 0
    %1789 = vmatmul.mubr.bf16.gmra.mrb[0].mxu0 %v1319
    %v1790 = vpop.f32.mrb[0].mxu0
    %v1791 = vadd.f32 %v1646, %v1790
    %v1792 = vpop.f32.mrb[0].mxu0
    %v1793 = vpop.f32.mrb[0].mxu0
    %v1794 = vadd.f32 %v1649, %v1793
    %v1795 = vpop.f32.mrb[0].mxu0
    %1796 = vmatprep.mubr.bf16.mxu0 0
    %1797 = vmatmul.mubr.bf16.gmra.mrb[0].mxu0 %v1320
    %v1798 = vpop.f32.mrb[0].mxu0
    %v1799 = vadd.f32 %v1654, %v1798
    %v1800 = vpop.f32.mrb[0].mxu0
    %v1801 = vpop.f32.mrb[0].mxu0
    %v1802 = vadd.f32 %v1657, %v1801
    %v1803 = vpop.f32.mrb[0].mxu0
    %1804 = vmatprep.mubr.bf16.mxu0 0
    %1805 = vmatmul.mubr.bf16.gmra.mrb[0].mxu0 %v1321
    %v1806 = vpop.f32.mrb[0].mxu0
    %v1807 = vadd.f32 %v1662, %v1806
    %v1808 = vpop.f32.mrb[0].mxu0
    %v1809 = vpop.f32.mrb[0].mxu0
    %v1810 = vadd.f32 %v1665, %v1809
    %v1811 = vpop.f32.mrb[0].mxu0
    %1812 = vdwg.mxu0
    %v1813 = vld [vmem:[%s12] sm:$0x1]
    %v1815 = vlaneseq
    %v1816 = vshrl.u32 %v1815, 7
    %v1817 = vsub.s32 0, %v1816
    %v1818 = vrot.slane %v1813, %v1817
    %v1820 = vadd.f32 %v1751, %v1818
    %v1821 = vadd.f32 %v1754, %v1818
    %v1822 = vadd.f32 %v1759, %v1818
    %v1823 = vadd.f32 %v1762, %v1818
    %v1824 = vadd.f32 %v1767, %v1818
    %v1825 = vadd.f32 %v1770, %v1818
    %v1826 = vadd.f32 %v1775, %v1818
    %v1827 = vadd.f32 %v1778, %v1818
    %v1828 = vadd.f32 %v1783, %v1818
    %v1829 = vadd.f32 %v1786, %v1818
    %v1830 = vadd.f32 %v1791, %v1818
    %v1831 = vadd.f32 %v1794, %v1818
    %v1832 = vadd.f32 %v1799, %v1818
    %v1833 = vadd.f32 %v1802, %v1818
    %v1834 = vadd.f32 %v1807, %v1818
    %v1835 = vadd.f32 %v1810, %v1818
    %1836 = vst [vmem:[#allocation19] sm:$0xff] %v1820
    %1837 = vst [vmem:[#allocation19 + $0x8] sm:$0xff] %v1821
    %1838 = vst [vmem:[#allocation19 + $0x10] sm:$0xff] %v1822
    %1839 = vst [vmem:[#allocation19 + $0x18] sm:$0xff] %v1823
    %1840 = vst [vmem:[#allocation19 + $0x20] sm:$0xff] %v1824
    %1841 = vst [vmem:[#allocation19 + $0x28] sm:$0xff] %v1825
    %1842 = vst [vmem:[#allocation19 + $0x30] sm:$0xff] %v1826
    %1843 = vst [vmem:[#allocation19 + $0x38] sm:$0xff] %v1827
    %1844 = vst [vmem:[#allocation19 + $0x40] sm:$0xff] %v1828
    %1845 = vst [vmem:[#allocation19 + $0x48] sm:$0xff] %v1829
    %1846 = vst [vmem:[#allocation19 + $0x50] sm:$0xff] %v1830
    %1847 = vst [vmem:[#allocation19 + $0x58] sm:$0xff] %v1831
    %1848 = vst [vmem:[#allocation19 + $0x60] sm:$0xff] %v1832
    %1849 = vst [vmem:[#allocation19 + $0x68] sm:$0xff] %v1833
    %1850 = vst [vmem:[#allocation19 + $0x70] sm:$0xff] %v1834
    %1851 = vst [vmem:[#allocation19 + $0x78] sm:$0xff] %v1835
    // Predicated region
    $region94: #{tpu_custom_call.1} parent=1 // pred_check
      _
    $region95: #{tpu_custom_call.1} parent=1 // pred_check_branch
      %1853 = sbr.rel (0) target = $region97
    $region96: #{tpu_custom_call.1} parent=1 // pred_region
      %s1855 = ssub.s32 2048, 2048
      %1856 = vsyncadd [#allocation4], %s1855
      %s1857 = sshll.u32 [#allocation19], 4
      %s1858 = int_to_ptr.vmem [resolvable:$true] %s1857
      %1863 = dma.vmem_to_hbm [thread:$0]  %s1858, 2048, %s13, [#allocation4], 128, 128, 8
    $region97: #{tpu_custom_call.1} parent=1 // pred_fallthru
      _
    // Predicated region
    $region98: #{tpu_custom_call.1} parent=1 // pred_check
      _
    $region99: #{tpu_custom_call.1} parent=1 // pred_check_branch
      %1865 = sbr.rel (0) target = $region101
    $region100: #{tpu_custom_call.1} parent=1 // pred_region
      %1866 = dma.done [#allocation4], 2048
    $region101: #{tpu_custom_call.1} parent=1 // pred_fallthru
      _
    %1867 = vsyncpa [#allocation3], 1
    %1868 = vsyncpa [#allocation6], 1
    %1869 = vsyncpa [#allocation9], 1
    %1870 = vsyncpa [#allocation12], 1
    %1871 = vsyncpa [#allocation15], 1
    %1872 = vsyncpa [#allocation18], 1
    %1873 = vsyncpa [#allocation4], 1

</llo_original>
